<compile_context>
chip_gen: v5e
topology: v5e:2x2
jax: 0.10.0
libtpu: 0.0.40
codegen_flags: <defaults>
</compile_context>

<pallas_src>
import functools
import math

import jax
import jax.numpy as jnp
from jax import lax
from jax.experimental import pallas as pl
from jax.experimental.pallas import tpu as pltpu

NEG_SLOPE = 0.2            # PyG GATConv default negative_slope
MASK_VAL = -1e9            # additive mask value for non-edges
LANE = 128                 # TPU lane width
SUB = 8                    # TPU sublane width
MXU_DTYPE = jnp.bfloat16   # MXU operand dtype (accumulation stays f32)


def _round_up(v, m):
    return (v + m - 1) // m * m


def _pad2(a, rows, cols):
    return jnp.pad(a, ((0, rows - a.shape[0]), (0, cols - a.shape[1])))


def _vmem_limit(blocks, extra_bytes=0):
    """Explicit VMEM budget: double-buffered pipeline blocks + temporaries + headroom,
    capped below v7x's 64 MiB physical VMEM."""
    nbytes = sum(math.prod(s) * jnp.dtype(d).itemsize for s, d in blocks)
    return int(min(60 * 1024 * 1024, 2 * nbytes + extra_bytes + 8 * 1024 * 1024))


def _pick_logit_dtype():
    """bf16 VPU/EUP exists on v6e/v7x; keep the logit chain f32 on v5e/v4 (no bf16 VALU)."""
    try:
        kind = jax.devices()[0].device_kind.lower()
    except Exception:
        return jnp.float32
    return jnp.bfloat16 if any(t in kind for t in ("v6", "v7", "tpu7")) else jnp.float32


def _vec_pad8(v, cols):
    """(1, d) attention vector -> (8, cols) bf16 with the real vector in row 0
    (sublane-aligned operand for the tiny alpha-projection matmuls)."""
    out = jnp.zeros((SUB, cols), jnp.float32).at[0, : v.shape[1]].set(v[0])
    return out.astype(MXU_DTYPE)


# --------------------------------------------------------------- kernel helpers ----

def _alpha_proj(h, a_dst8, a_src8):
    """Attention-logit projections for one tile of nodes.

    h      : (T, D) bf16 transformed features
    a_dst8 : (8, D) bf16, a_dst in row 0
    a_src8 : (8, D) bf16, a_src in row 0
    returns (T, 1) f32 dst column and lane-dense (1, T) f32 src row.
    """
    dn = (((1,), (1,)), ((), ()))
    adst = lax.dot_general(h, a_dst8, dn, preferred_element_type=jnp.float32)[:, 0:1]
    asrc = lax.dot_general(a_src8, h, dn, preferred_element_type=jnp.float32)[0:1, :]
    return adst, asrc


def _attend(mask_add, h_all, adst_col, asrc_row, *, logit_dtype, exact_recip):
    """Dense single-head GAT attention for one tile of destination nodes.

    mask_add : (T, S) bf16 additive mask (0 on edges / self-loops, -1e9 elsewhere)
    h_all    : (S, D) bf16 transformed source features
    adst_col : (T, 1) f32,  asrc_row : (1, S) f32
    """
    e = adst_col.astype(logit_dtype) + asrc_row.astype(logit_dtype)   # (T, S) logits
    e = jnp.maximum(e, NEG_SLOPE * e)                 # LeakyReLU (1 mul + 1 max on VPU)
    e = e + mask_add                                  # non-edge mask as a single add
    p = jnp.exp(e - jnp.max(e, axis=-1, keepdims=True))
    denom = jnp.sum(p.astype(jnp.float32), axis=-1, keepdims=True)    # f32 denominator
    agg = jnp.dot(p.astype(MXU_DTYPE), h_all, preferred_element_type=jnp.float32)
    if exact_recip:                                   # exact in the decoder layer
        return agg / denom
    return agg * pl.reciprocal(denom, approx=True)    # EUP approx in the encoder layer


# --------------------------------------------------------------- fused kernel ----

def _fused_kernel(x_ref, mask_ref, w1_ref, a1d_ref, a1s_ref, b1_ref,
                  w2_ref, a2d_ref, a2s_ref, b2_ref, xhat_ref, loss_ref,
                  *, n_valid, denom, logit_dtype):
    """Whole forward pass (both GAT layers + reconstruction + MSE) in one kernel."""
    x = x_ref[...]
    # encoder layer
    h1 = jnp.dot(x.astype(MXU_DTYPE), w1_ref[...],
                 preferred_element_type=jnp.float32).astype(MXU_DTYPE)
    adst1, asrc1 = _alpha_proj(h1, a1d_ref[...], a1s_ref[...])
    out1 = _attend(mask_ref[...], h1, adst1, asrc1,
                   logit_dtype=logit_dtype, exact_recip=False) + b1_ref[...]
    act = jnp.where(out1 > 0, out1, jnp.exp(out1) - 1.0)              # ELU
    # decoder layer
    h2 = jnp.dot(act.astype(MXU_DTYPE), w2_ref[...],
                 preferred_element_type=jnp.float32).astype(MXU_DTYPE)
    adst2, asrc2 = _alpha_proj(h2, a2d_ref[...], a2s_ref[...])
    x_hat = _attend(mask_ref[...], h2, adst2, asrc2,
                    logit_dtype=logit_dtype, exact_recip=True) + b2_ref[...]
    xhat_ref[...] = x_hat
    # MSE epilogue (padded feature columns are exactly 0 on both sides)
    diff = x_hat - x
    rows = lax.broadcasted_iota(jnp.int32, diff.shape, 0)
    diff = jnp.where(rows < n_valid, diff, 0.0)
    loss_ref[0, 0] = jnp.sum(diff * diff) / jnp.float32(denom)


# --------------------------------------------------------------- tiled kernels ----

def _proj1_kernel(x_ref, w1_ref, a1d_ref, a1s_ref, h1_ref, adst_ref, asrc_ref):
    """Layer-1 projection + alpha projections for one node tile."""
    h = jnp.dot(x_ref[...].astype(MXU_DTYPE), w1_ref[...],
                preferred_element_type=jnp.float32).astype(MXU_DTYPE)
    h1_ref[...] = h
    adst, asrc = _alpha_proj(h, a1d_ref[...], a1s_ref[...])
    adst_ref[...] = adst
    asrc_ref[...] = asrc


def _attn1_proj2_kernel(mask_ref, h1_ref, adst_ref, asrc_ref, b1_ref,
                        w2_ref, a2d_ref, a2s_ref, h2_ref, adst2_ref, asrc2_ref,
                        *, logit_dtype):
    """Encoder attention (+bias, ELU) fused with the decoder projection for a dst tile."""
    out1 = _attend(mask_ref[...], h1_ref[...], adst_ref[...], asrc_ref[...],
                   logit_dtype=logit_dtype, exact_recip=False) + b1_ref[...]
    act = jnp.where(out1 > 0, out1, jnp.exp(out1) - 1.0)              # ELU
    h2 = jnp.dot(act.astype(MXU_DTYPE), w2_ref[...],
                 preferred_element_type=jnp.float32).astype(MXU_DTYPE)
    h2_ref[...] = h2
    adst2, asrc2 = _alpha_proj(h2, a2d_ref[...], a2s_ref[...])
    adst2_ref[...] = adst2
    asrc2_ref[...] = asrc2


def _attn2_mse_kernel(x_ref, mask_ref, h2_ref, adst_ref, asrc_ref, b2_ref,
                      xhat_ref, sse_ref, *, tile_n, n_valid, logit_dtype):
    """Decoder attention -> x_hat tile, plus per-dst-row SSE for the loss (fused MSE)."""
    x_hat = _attend(mask_ref[...], h2_ref[...], adst_ref[...], asrc_ref[...],
                    logit_dtype=logit_dtype, exact_recip=True) + b2_ref[...]
    xhat_ref[...] = x_hat
    diff = x_hat - x_ref[...]
    rows = pl.program_id(0) * tile_n + lax.broadcasted_iota(jnp.int32, diff.shape, 0)
    diff = jnp.where(rows < n_valid, diff, 0.0)
    sse_ref[...] = jnp.sum(diff * diff, axis=-1, keepdims=True)


# ------------------------------------------------------------------- wrapper ----

def gat_anomaly_detector(x, edge_index, params, *, tile_n=128, fuse_limit=512,
                         logit_dtype=None):
    """x: (N, F) f32 node features; edge_index: (2, E) int32 [src; dst] -> (x_hat, loss)."""
    w1, a1s, a1d, b1, w2, a2s, a2d, b2 = params
    n, f = x.shape
    h_dim = w1.shape[1]
    if logit_dtype is None:
        logit_dtype = _pick_logit_dtype()

    f_pad = _round_up(f, LANE)
    h_pad = _round_up(h_dim, LANE)
    use_fused = _round_up(n, LANE) <= fuse_limit
    n_pad = _round_up(n, LANE if use_fused else max(tile_n, LANE))

    # Glue: additive attention mask (0 on edges & self-loops -- padded rows too, so their
    # softmax stays finite; their outputs are discarded -- and -1e9 elsewhere).  bf16
    # halves the only O(N^2) HBM stream and turns the non-edge mask into a single add.
    src, dst = edge_index[0], edge_index[1]
    adj = jnp.zeros((n_pad, n_pad), jnp.float32).at[dst, src].set(1.0)
    adj = jnp.maximum(adj, jnp.eye(n_pad, dtype=jnp.float32))
    mask_add = jnp.where(adj > 0, 0.0, MASK_VAL).astype(jnp.bfloat16)

    x_pad = _pad2(x, n_pad, f_pad)
    w1b = _pad2(w1, f_pad, h_pad).astype(MXU_DTYPE)
    w2b = _pad2(w2, h_pad, f_pad).astype(MXU_DTYPE)
    a1d8, a1s8 = _vec_pad8(a1d, h_pad), _vec_pad8(a1s, h_pad)
    a2d8, a2s8 = _vec_pad8(a2d, f_pad), _vec_pad8(a2s, f_pad)
    b1p = _pad2(b1, 1, h_pad)
    b2p = _pad2(b2, 1, f_pad)

    if use_fused:
        # ---- single fused kernel: proj1 -> attn1 -> ELU -> proj2 -> attn2 -> MSE ----
        vlim = _vmem_limit(
            [((n_pad, f_pad), jnp.float32), ((n_pad, n_pad), jnp.bfloat16),
             ((f_pad, h_pad), MXU_DTYPE), ((h_pad, f_pad), MXU_DTYPE),
             ((n_pad, f_pad), jnp.float32)],
            extra_bytes=4 * n_pad * n_pad * 4 + 6 * n_pad * max(h_pad, f_pad) * 4)
        full = lambda i: (0, 0)
        x_hat_pad, loss = pl.pallas_call(
            functools.partial(_fused_kernel, n_valid=n, denom=n * f,
                              logit_dtype=logit_dtype),
            grid=(1,),
            in_specs=[pl.BlockSpec((n_pad, f_pad), full),   # x
                      pl.BlockSpec((n_pad, n_pad), full),   # additive edge mask
                      pl.BlockSpec((f_pad, h_pad), full),   # W1
                      pl.BlockSpec((SUB, h_pad), full),     # a1_dst
                      pl.BlockSpec((SUB, h_pad), full),     # a1_src
                      pl.BlockSpec((1, h_pad), full),       # b1
                      pl.BlockSpec((h_pad, f_pad), full),   # W2
                      pl.BlockSpec((SUB, f_pad), full),     # a2_dst
                      pl.BlockSpec((SUB, f_pad), full),     # a2_src
                      pl.BlockSpec((1, f_pad), full)],      # b2
            out_specs=(pl.BlockSpec((n_pad, f_pad), full),
                       pl.BlockSpec(memory_space=pltpu.MemorySpace.SMEM)),
            out_shape=(jax.ShapeDtypeStruct((n_pad, f_pad), jnp.float32),
                       jax.ShapeDtypeStruct((1, 1), jnp.float32)),
            compiler_params=pltpu.CompilerParams(
                dimension_semantics=("arbitrary",), vmem_limit_bytes=vlim),
        )(x_pad, mask_add, w1b, a1d8, a1s8, b1p, w2b, a2d8, a2s8, b2p)
        return x_hat_pad[:n, :f], loss[0, 0]

    # ---- tiled path for larger graphs: 3 kernels, every grid axis "parallel" ----
    assert tile_n % LANE == 0, "tile_n must be a multiple of 128"
    nt = n_pad // tile_n

    # K1: layer-1 projection + alpha projections per node tile.
    vlim1 = _vmem_limit([((tile_n, f_pad), jnp.float32), ((f_pad, h_pad), MXU_DTYPE),
                         ((SUB, h_pad), MXU_DTYPE), ((SUB, h_pad), MXU_DTYPE),
                         ((tile_n, h_pad), MXU_DTYPE), ((tile_n, 1), jnp.float32),
                         ((1, tile_n), jnp.float32)],
                        extra_bytes=2 * tile_n * h_pad * 4)
    h1, adst1, asrc1 = pl.pallas_call(
        _proj1_kernel,
        grid=(nt,),
        in_specs=[pl.BlockSpec((tile_n, f_pad), lambda i: (i, 0)),
                  pl.BlockSpec((f_pad, h_pad), lambda i: (0, 0)),
                  pl.BlockSpec((SUB, h_pad), lambda i: (0, 0)),
                  pl.BlockSpec((SUB, h_pad), lambda i: (0, 0))],
        out_specs=(pl.BlockSpec((tile_n, h_pad), lambda i: (i, 0)),
                   pl.BlockSpec((tile_n, 1), lambda i: (i, 0)),
                   pl.BlockSpec((1, tile_n), lambda i: (0, i))),
        out_shape=(jax.ShapeDtypeStruct((n_pad, h_pad), MXU_DTYPE),
                   jax.ShapeDtypeStruct((n_pad, 1), jnp.float32),
                   jax.ShapeDtypeStruct((1, n_pad), jnp.float32)),
        compiler_params=pltpu.CompilerParams(
            dimension_semantics=("parallel",), vmem_limit_bytes=vlim1),
    )(x_pad, w1b, a1d8, a1s8)

    # K2: encoder attention + ELU fused with the decoder projection, per dst tile.
    vlim2 = _vmem_limit([((tile_n, n_pad), jnp.bfloat16), ((n_pad, h_pad), MXU_DTYPE),
                         ((tile_n, 1), jnp.float32), ((1, n_pad), jnp.float32),
                         ((1, h_pad), jnp.float32), ((h_pad, f_pad), MXU_DTYPE),
                         ((SUB, f_pad), MXU_DTYPE), ((SUB, f_pad), MXU_DTYPE),
                         ((tile_n, f_pad), MXU_DTYPE), ((tile_n, 1), jnp.float32),
                         ((1, tile_n), jnp.float32)],
                        extra_bytes=3 * tile_n * n_pad * 4
                        + 3 * tile_n * max(h_pad, f_pad) * 4)
    h2, adst2, asrc2 = pl.pallas_call(
        functools.partial(_attn1_proj2_kernel, logit_dtype=logit_dtype),
        grid=(nt,),
        in_specs=[pl.BlockSpec((tile_n, n_pad), lambda i: (i, 0)),   # mask rows (dst tile)
                  pl.BlockSpec((n_pad, h_pad), lambda i: (0, 0)),    # h1 of all sources
                  pl.BlockSpec((tile_n, 1), lambda i: (i, 0)),       # adst1 (dst tile)
                  pl.BlockSpec((1, n_pad), lambda i: (0, 0)),        # asrc1 row
                  pl.BlockSpec((1, h_pad), lambda i: (0, 0)),        # b1
                  pl.BlockSpec((h_pad, f_pad), lambda i: (0, 0)),    # W2
                  pl.BlockSpec((SUB, f_pad), lambda i: (0, 0)),      # a2_dst
                  pl.BlockSpec((SUB, f_pad), lambda i: (0, 0))],     # a2_src
        out_specs=(pl.BlockSpec((tile_n, f_pad), lambda i: (i, 0)),
                   pl.BlockSpec((tile_n, 1), lambda i: (i, 0)),
                   pl.BlockSpec((1, tile_n), lambda i: (0, i))),
        out_shape=(jax.ShapeDtypeStruct((n_pad, f_pad), MXU_DTYPE),
                   jax.ShapeDtypeStruct((n_pad, 1), jnp.float32),
                   jax.ShapeDtypeStruct((1, n_pad), jnp.float32)),
        compiler_params=pltpu.CompilerParams(
            dimension_semantics=("parallel",), vmem_limit_bytes=vlim2),
    )(mask_add, h1, adst1, asrc1, b1p, w2b, a2d8, a2s8)

    # K3: decoder attention -> x_hat tile + fused per-row SSE for the loss.
    vlim3 = _vmem_limit([((tile_n, f_pad), jnp.float32), ((tile_n, n_pad), jnp.bfloat16),
                         ((n_pad, f_pad), MXU_DTYPE), ((tile_n, 1), jnp.float32),
                         ((1, n_pad), jnp.float32), ((1, f_pad), jnp.float32),
                         ((tile_n, f_pad), jnp.float32), ((tile_n, 1), jnp.float32)],
                        extra_bytes=3 * tile_n * n_pad * 4 + 2 * tile_n * f_pad * 4)
    x_hat_pad, sse = pl.pallas_call(
        functools.partial(_attn2_mse_kernel, tile_n=tile_n, n_valid=n,
                          logit_dtype=logit_dtype),
        grid=(nt,),
        in_specs=[pl.BlockSpec((tile_n, f_pad), lambda i: (i, 0)),   # x (dst tile)
                  pl.BlockSpec((tile_n, n_pad), lambda i: (i, 0)),   # mask rows
                  pl.BlockSpec((n_pad, f_pad), lambda i: (0, 0)),    # h2 of all sources
                  pl.BlockSpec((tile_n, 1), lambda i: (i, 0)),       # adst2 (dst tile)
                  pl.BlockSpec((1, n_pad), lambda i: (0, 0)),        # asrc2 row
                  pl.BlockSpec((1, f_pad), lambda i: (0, 0))],       # b2
        out_specs=(pl.BlockSpec((tile_n, f_pad), lambda i: (i, 0)),
                   pl.BlockSpec((tile_n, 1), lambda i: (i, 0))),
        out_shape=(jax.ShapeDtypeStruct((n_pad, f_pad), jnp.float32),
                   jax.ShapeDtypeStruct((n_pad, 1), jnp.float32)),
        compiler_params=pltpu.CompilerParams(
            dimension_semantics=("parallel",), vmem_limit_bytes=vlim3),
    )(x_pad, mask_add, h2, adst2, asrc2, b2p)

    loss = jnp.sum(sse) / jnp.float32(n * f)
    return x_hat_pad[:n, :f], loss


# -------------------------------------------------------------- pure-JAX reference ----

def _gat_layer_ref(h_in, adj, w, a_src, a_dst, bias):
    hm = h_in @ w
    alpha_dst = hm @ a_dst.T                    # (N, 1)
    alpha_src = (hm @ a_src.T).T                # (1, N)
    e = alpha_dst + alpha_src
    e = jnp.where(e > 0, e, NEG_SLOPE * e)
    e = jnp.where(adj > 0, e, jnp.float32(MASK_VAL))
    p = jnp.exp(e - jnp.max(e, axis=-1, keepdims=True))
    att = p / jnp.sum(p, axis=-1, keepdims=True)
    return att @ hm + bias


def _reference(x, edge_index, params):
    w1, a1s, a1d, b1, w2, a2s, a2d, b2 = params
    n = x.shape[0]
    adj = jnp.zeros((n, n), jnp.float32).at[edge_index[1], edge_index[0]].set(1.0)
    adj = jnp.maximum(adj, jnp.eye(n, dtype=jnp.float32))
    h1 = _gat_layer_ref(x, adj, w1, a1s, a1d, b1)
    h1 = jnp.where(h1 > 0, h1, jnp.exp(h1) - 1.0)
    x_hat = _gat_layer_ref(h1, adj, w2, a2s, a2d, b2)
    return x_hat, jnp.mean((x_hat - x) ** 2)


def _ring_graph(n):
    idx = jnp.arange(n)
    src = jnp.concatenate([idx, idx])
    dst = jnp.concatenate([(idx + 1) % n, (idx - 1) % n])
    return jnp.stack([src, dst]).astype(jnp.int32)


if __name__ == "__main__":
    key = jax.random.PRNGKey(0)
    N, F, H = 112, 16, 32
    ks = jax.random.split(key, 8)
    x = jax.random.normal(ks[0], (N, F), jnp.float32)
    edge_index = _ring_graph(N)

    def glorot(k, shape):
        return jax.random.normal(k, shape, jnp.float32) * jnp.sqrt(2.0 / (shape[0] + shape[1]))

    params = (
        glorot(ks[1], (F, H)),            # W1
        glorot(ks[2], (1, H)),            # a1_src
        glorot(ks[3], (1, H)),            # a1_dst
        jnp.zeros((1, H), jnp.float32),   # b1
        glorot(ks[4], (H, F)),            # W2
        glorot(ks[5], (1, F)),            # a2_src
        glorot(ks[6], (1, F)),            # a2_dst
        jnp.zeros((1, F), jnp.float32),   # b2
    )

    # --- demo shapes: fully fused single-kernel path ---
    x_hat, loss = jax.jit(gat_anomaly_detector)(x, edge_index, params)
    jax.block_until_ready((x_hat, loss))
    xr, lr = _reference(x, edge_index, params)
    # Tolerances account for bf16 MXU operands / bf16 logit chain (v6e/v7x) / approx
    # reciprocal in the encoder layer vs the exact f32 reference.
    assert jnp.allclose(x_hat, xr, atol=6e-2, rtol=6e-2), "x_hat mismatch (fused path)"
    assert jnp.allclose(loss, lr, atol=6e-2, rtol=6e-2), "loss mismatch (fused path)"

    # --- larger graph: exercise the tiled multi-kernel path (2 dst tiles of 128) ---
    N2 = 200
    x2 = jax.random.normal(ks[7], (N2, F), jnp.float32)
    ei2 = _ring_graph(N2)
    x_hat2, loss2 = jax.jit(functools.partial(gat_anomaly_detector, fuse_limit=0))(
        x2, ei2, params)
    jax.block_until_ready((x_hat2, loss2))
    xr2, lr2 = _reference(x2, ei2, params)
    assert jnp.allclose(x_hat2, xr2, atol=6e-2, rtol=6e-2), "x_hat mismatch (tiled path)"
    assert jnp.allclose(loss2, lr2, atol=6e-2, rtol=6e-2), "loss mismatch (tiled path)"

    print("KERNEL_OK")
</pallas_src>

<mosaic_0001>
module attributes {stable_mosaic.version = 11 : i64} {
  func.func @_fused_kernel(%arg0: i32, %arg1: memref<128x128xf32, #tpu.memory_space<vmem>>, %arg2: memref<128x128xbf16, #tpu.memory_space<vmem>>, %arg3: memref<128x128xbf16, #tpu.memory_space<vmem>>, %arg4: memref<8x128xbf16, #tpu.memory_space<vmem>>, %arg5: memref<8x128xbf16, #tpu.memory_space<vmem>>, %arg6: memref<1x128xf32, #tpu.memory_space<vmem>>, %arg7: memref<128x128xbf16, #tpu.memory_space<vmem>>, %arg8: memref<8x128xbf16, #tpu.memory_space<vmem>>, %arg9: memref<8x128xbf16, #tpu.memory_space<vmem>>, %arg10: memref<1x128xf32, #tpu.memory_space<vmem>>, %arg11: memref<128x128xf32, #tpu.memory_space<vmem>>, %arg12: memref<1x1xf32, #tpu.memory_space<smem>>) attributes {dimension_semantics = [#tpu.dimension_semantics<arbitrary>], iteration_bounds = array<i64: 1>, scalar_prefetch = 0 : i64, scratch_operands = 0 : i64, tpu.core_type = #tpu.core_type<tc>, window_params = [{pipeline_mode = #tpu.pipeline_mode<synchronous>, transform_indices = @transform_0, window_bounds = array<i64: 128, 128>}, {pipeline_mode = #tpu.pipeline_mode<synchronous>, transform_indices = @transform_1, window_bounds = array<i64: 128, 128>}, {pipeline_mode = #tpu.pipeline_mode<synchronous>, transform_indices = @transform_2, window_bounds = array<i64: 128, 128>}, {pipeline_mode = #tpu.pipeline_mode<synchronous>, transform_indices = @transform_3, window_bounds = array<i64: 8, 128>}, {pipeline_mode = #tpu.pipeline_mode<synchronous>, transform_indices = @transform_4, window_bounds = array<i64: 8, 128>}, {pipeline_mode = #tpu.pipeline_mode<synchronous>, transform_indices = @transform_5, window_bounds = array<i64: 1, 128>}, {pipeline_mode = #tpu.pipeline_mode<synchronous>, transform_indices = @transform_6, window_bounds = array<i64: 128, 128>}, {pipeline_mode = #tpu.pipeline_mode<synchronous>, transform_indices = @transform_7, window_bounds = array<i64: 8, 128>}, {pipeline_mode = #tpu.pipeline_mode<synchronous>, transform_indices = @transform_8, window_bounds = array<i64: 8, 128>}, {pipeline_mode = #tpu.pipeline_mode<synchronous>, transform_indices = @transform_9, window_bounds = array<i64: 1, 128>}, {pipeline_mode = #tpu.pipeline_mode<synchronous>, transform_indices = @transform_10, window_bounds = array<i64: 128, 128>}, {transform_indices = @transform_11, window_bounds = array<i64: 1, 1>}]} {
    %c0 = arith.constant 0 : index
    %c0_0 = arith.constant 0 : index
    %0 = vector.load %arg1[%c0, %c0_0] : memref<128x128xf32, #tpu.memory_space<vmem>>, vector<128x128xf32>
    %1 = arith.truncf %0 : vector<128x128xf32> to vector<128x128xbf16>
    %c0_1 = arith.constant 0 : index
    %c0_2 = arith.constant 0 : index
    %2 = vector.load %arg3[%c0_1, %c0_2] : memref<128x128xbf16, #tpu.memory_space<vmem>>, vector<128x128xbf16>
    %cst = arith.constant dense<0.000000e+00> : vector<128x128xf32>
    %3 = tpu.matmul %1, %2, %cst {dimension_numbers = #tpu.dot_dimension_numbers<[1], [0], [0], [1], [0, 0, 1, 1], [], []>} : vector<128x128xbf16>, vector<128x128xbf16>, vector<128x128xf32> -> vector<128x128xf32>
    %4 = arith.truncf %3 : vector<128x128xf32> to vector<128x128xbf16>
    %c0_3 = arith.constant 0 : index
    %c0_4 = arith.constant 0 : index
    %5 = vector.load %arg4[%c0_3, %c0_4] : memref<8x128xbf16, #tpu.memory_space<vmem>>, vector<8x128xbf16>
    %c0_5 = arith.constant 0 : index
    %c0_6 = arith.constant 0 : index
    %6 = vector.load %arg5[%c0_5, %c0_6] : memref<8x128xbf16, #tpu.memory_space<vmem>>, vector<8x128xbf16>
    %cst_7 = arith.constant dense<0.000000e+00> : vector<128x8xf32>
    %7 = tpu.matmul %4, %5, %cst_7 {dimension_numbers = #tpu.dot_dimension_numbers<[1], [1], [0], [0], [0, 0, 1, 0], [], []>} : vector<128x128xbf16>, vector<8x128xbf16>, vector<128x8xf32> -> vector<128x8xf32>
    %8 = vector.extract_strided_slice %7 {offsets = [0, 0], sizes = [128, 1], strides = [1, 1]} : vector<128x8xf32> to vector<128x1xf32>
    %cst_8 = arith.constant dense<0.000000e+00> : vector<8x128xf32>
    %9 = tpu.matmul %6, %4, %cst_8 {dimension_numbers = #tpu.dot_dimension_numbers<[1], [1], [0], [0], [0, 0, 1, 0], [], []>} : vector<8x128xbf16>, vector<128x128xbf16>, vector<8x128xf32> -> vector<8x128xf32>
    %10 = vector.extract_strided_slice %9 {offsets = [0, 0], sizes = [1, 128], strides = [1, 1]} : vector<8x128xf32> to vector<1x128xf32>
    %c0_9 = arith.constant 0 : index
    %c0_10 = arith.constant 0 : index
    %11 = vector.load %arg2[%c0_9, %c0_10] : memref<128x128xbf16, #tpu.memory_space<vmem>>, vector<128x128xbf16>
    %12 = vector.broadcast %8 : vector<128x1xf32> to vector<128x128xf32>
    %13 = vector.broadcast %10 : vector<1x128xf32> to vector<128x128xf32>
    %14 = arith.addf %12, %13 : vector<128x128xf32>
    %cst_11 = arith.constant 2.000000e-01 : f32
    %15 = vector.broadcast %cst_11 : f32 to vector<128x128xf32>
    %16 = arith.mulf %15, %14 : vector<128x128xf32>
    %17 = arith.maximumf %14, %16 : vector<128x128xf32>
    %18 = arith.extf %11 : vector<128x128xbf16> to vector<128x128xf32>
    %19 = arith.addf %17, %18 : vector<128x128xf32>
    %cst_12 = arith.constant dense<0xFF800000> : vector<128xf32>
    %20 = vector.multi_reduction <maximumf>, %19, %cst_12 [1] : vector<128x128xf32> to vector<128xf32>
    %21 = vector.shape_cast %20 : vector<128xf32> to vector<128x1xf32>
    %22 = vector.broadcast %21 : vector<128x1xf32> to vector<128x128xf32>
    %23 = arith.subf %19, %22 : vector<128x128xf32>
    %24 = math.exp %23 : vector<128x128xf32>
    %cst_13 = arith.constant dense<0.000000e+00> : vector<128xf32>
    %25 = vector.multi_reduction <add>, %24, %cst_13 [1] : vector<128x128xf32> to vector<128xf32>
    %26 = vector.shape_cast %25 : vector<128xf32> to vector<128x1xf32>
    %27 = arith.truncf %24 : vector<128x128xf32> to vector<128x128xbf16>
    %cst_14 = arith.constant dense<0.000000e+00> : vector<128x128xf32>
    %28 = tpu.matmul %27, %4, %cst_14 {dimension_numbers = #tpu.dot_dimension_numbers<[1], [0], [0], [1], [0, 0, 1, 1], [], []>} : vector<128x128xbf16>, vector<128x128xbf16>, vector<128x128xf32> -> vector<128x128xf32>
    %29 = tpu.reciprocal %26 {approx = true} : vector<128x1xf32> -> vector<128x1xf32>
    %30 = vector.broadcast %29 : vector<128x1xf32> to vector<128x128xf32>
    %31 = arith.mulf %28, %30 : vector<128x128xf32>
    %c0_15 = arith.constant 0 : index
    %c0_16 = arith.constant 0 : index
    %32 = vector.load %arg6[%c0_15, %c0_16] : memref<1x128xf32, #tpu.memory_space<vmem>>, vector<1x128xf32>
    %33 = vector.broadcast %32 : vector<1x128xf32> to vector<128x128xf32>
    %34 = arith.addf %31, %33 : vector<128x128xf32>
    %cst_17 = arith.constant 0.000000e+00 : f32
    %35 = vector.broadcast %cst_17 : f32 to vector<128x128xf32>
    %36 = arith.cmpf ogt, %34, %35 : vector<128x128xf32>
    %37 = math.exp %34 : vector<128x128xf32>
    %cst_18 = arith.constant 1.000000e+00 : f32
    %38 = vector.broadcast %cst_18 : f32 to vector<128x128xf32>
    %39 = arith.subf %37, %38 : vector<128x128xf32>
    %40 = arith.select %36, %34, %39 : vector<128x128xi1>, vector<128x128xf32>
    %41 = arith.truncf %40 : vector<128x128xf32> to vector<128x128xbf16>
    %c0_19 = arith.constant 0 : index
    %c0_20 = arith.constant 0 : index
    %42 = vector.load %arg7[%c0_19, %c0_20] : memref<128x128xbf16, #tpu.memory_space<vmem>>, vector<128x128xbf16>
    %cst_21 = arith.constant dense<0.000000e+00> : vector<128x128xf32>
    %43 = tpu.matmul %41, %42, %cst_21 {dimension_numbers = #tpu.dot_dimension_numbers<[1], [0], [0], [1], [0, 0, 1, 1], [], []>} : vector<128x128xbf16>, vector<128x128xbf16>, vector<128x128xf32> -> vector<128x128xf32>
    %44 = arith.truncf %43 : vector<128x128xf32> to vector<128x128xbf16>
    %c0_22 = arith.constant 0 : index
    %c0_23 = arith.constant 0 : index
    %45 = vector.load %arg8[%c0_22, %c0_23] : memref<8x128xbf16, #tpu.memory_space<vmem>>, vector<8x128xbf16>
    %c0_24 = arith.constant 0 : index
    %c0_25 = arith.constant 0 : index
    %46 = vector.load %arg9[%c0_24, %c0_25] : memref<8x128xbf16, #tpu.memory_space<vmem>>, vector<8x128xbf16>
    %cst_26 = arith.constant dense<0.000000e+00> : vector<128x8xf32>
    %47 = tpu.matmul %44, %45, %cst_26 {dimension_numbers = #tpu.dot_dimension_numbers<[1], [1], [0], [0], [0, 0, 1, 0], [], []>} : vector<128x128xbf16>, vector<8x128xbf16>, vector<128x8xf32> -> vector<128x8xf32>
    %48 = vector.extract_strided_slice %47 {offsets = [0, 0], sizes = [128, 1], strides = [1, 1]} : vector<128x8xf32> to vector<128x1xf32>
    %cst_27 = arith.constant dense<0.000000e+00> : vector<8x128xf32>
    %49 = tpu.matmul %46, %44, %cst_27 {dimension_numbers = #tpu.dot_dimension_numbers<[1], [1], [0], [0], [0, 0, 1, 0], [], []>} : vector<8x128xbf16>, vector<128x128xbf16>, vector<8x128xf32> -> vector<8x128xf32>
    %50 = vector.extract_strided_slice %49 {offsets = [0, 0], sizes = [1, 128], strides = [1, 1]} : vector<8x128xf32> to vector<1x128xf32>
    %c0_28 = arith.constant 0 : index
    %c0_29 = arith.constant 0 : index
    %51 = vector.load %arg2[%c0_28, %c0_29] : memref<128x128xbf16, #tpu.memory_space<vmem>>, vector<128x128xbf16>
    %52 = vector.broadcast %48 : vector<128x1xf32> to vector<128x128xf32>
    %53 = vector.broadcast %50 : vector<1x128xf32> to vector<128x128xf32>
    %54 = arith.addf %52, %53 : vector<128x128xf32>
    %cst_30 = arith.constant 2.000000e-01 : f32
    %55 = vector.broadcast %cst_30 : f32 to vector<128x128xf32>
    %56 = arith.mulf %55, %54 : vector<128x128xf32>
    %57 = arith.maximumf %54, %56 : vector<128x128xf32>
    %58 = arith.extf %51 : vector<128x128xbf16> to vector<128x128xf32>
    %59 = arith.addf %57, %58 : vector<128x128xf32>
    %cst_31 = arith.constant dense<0xFF800000> : vector<128xf32>
    %60 = vector.multi_reduction <maximumf>, %59, %cst_31 [1] : vector<128x128xf32> to vector<128xf32>
    %61 = vector.shape_cast %60 : vector<128xf32> to vector<128x1xf32>
    %62 = vector.broadcast %61 : vector<128x1xf32> to vector<128x128xf32>
    %63 = arith.subf %59, %62 : vector<128x128xf32>
    %64 = math.exp %63 : vector<128x128xf32>
    %cst_32 = arith.constant dense<0.000000e+00> : vector<128xf32>
    %65 = vector.multi_reduction <add>, %64, %cst_32 [1] : vector<128x128xf32> to vector<128xf32>
    %66 = vector.shape_cast %65 : vector<128xf32> to vector<128x1xf32>
    %67 = arith.truncf %64 : vector<128x128xf32> to vector<128x128xbf16>
    %cst_33 = arith.constant dense<0.000000e+00> : vector<128x128xf32>
    %68 = tpu.matmul %67, %44, %cst_33 {dimension_numbers = #tpu.dot_dimension_numbers<[1], [0], [0], [1], [0, 0, 1, 1], [], []>} : vector<128x128xbf16>, vector<128x128xbf16>, vector<128x128xf32> -> vector<128x128xf32>
    %69 = vector.broadcast %66 : vector<128x1xf32> to vector<128x128xf32>
    %70 = arith.divf %68, %69 : vector<128x128xf32>
    %c0_34 = arith.constant 0 : index
    %c0_35 = arith.constant 0 : index
    %71 = vector.load %arg10[%c0_34, %c0_35] : memref<1x128xf32, #tpu.memory_space<vmem>>, vector<1x128xf32>
    %72 = vector.broadcast %71 : vector<1x128xf32> to vector<128x128xf32>
    %73 = arith.addf %70, %72 : vector<128x128xf32>
    %c0_36 = arith.constant 0 : index
    %c0_37 = arith.constant 0 : index
    %74 = vector.load %arg11[%c0_36, %c0_37] : memref<128x128xf32, #tpu.memory_space<vmem>>, vector<128x128xf32>
    tpu.vector_store %arg11[%c0_36, %c0_37], %73 {strides = array<i32>} : memref<128x128xf32, #tpu.memory_space<vmem>>, vector<128x128xf32>,
    %75 = arith.subf %73, %0 : vector<128x128xf32>
    %76 = tpu.iota {dimensions = array<i32: 0>} : vector<128x128xi32>
    %c112_i32 = arith.constant 112 : i32
    %77 = vector.broadcast %c112_i32 : i32 to vector<128x128xi32>
    %78 = arith.cmpi slt, %76, %77 : vector<128x128xi32>
    %cst_38 = arith.constant 0.000000e+00 : f32
    %79 = vector.broadcast %cst_38 : f32 to vector<128x128xf32>
    %80 = arith.select %78, %75, %79 : vector<128x128xi1>, vector<128x128xf32>
    %81 = arith.mulf %80, %80 : vector<128x128xf32>
    %82 = vector.shape_cast %81 : vector<128x128xf32> to vector<1x128x128xf32>
    %cst_39 = arith.constant dense<0.000000e+00> : vector<1xf32>
    %83 = vector.multi_reduction <add>, %82, %cst_39 [1, 2] : vector<1x128x128xf32> to vector<1xf32>
    %84 = vector.shape_cast %83 : vector<1xf32> to vector<1x1x1xf32>
    %85 = vector.extract %84[0, 0, 0] : f32 from vector<1x1x1xf32>
    %cst_40 = arith.constant 1.792000e+03 : f32
    %86 = arith.divf %85, %cst_40 : f32
    %c0_41 = arith.constant 0 : index
    %c0_42 = arith.constant 0 : index
    %87 = memref.load %arg12[%c0_41, %c0_42] : memref<1x1xf32, #tpu.memory_space<smem>>
    memref.store %86, %arg12[%c0_41, %c0_42] : memref<1x1xf32, #tpu.memory_space<smem>>
    return
  }
  func.func @transform_0(%arg0: i32) -> (i32, i32) {
    %c0_i32 = arith.constant 0 : i32
    %c0_i32_0 = arith.constant 0 : i32
    %c0_i32_1 = arith.constant 0 : i32
    return %c0_i32, %c0_i32_0 : i32, i32
  }
  func.func @transform_1(%arg0: i32) -> (i32, i32) {
    %c0_i32 = arith.constant 0 : i32
    %c0_i32_0 = arith.constant 0 : i32
    %c0_i32_1 = arith.constant 0 : i32
    return %c0_i32, %c0_i32_0 : i32, i32
  }
  func.func @transform_2(%arg0: i32) -> (i32, i32) {
    %c0_i32 = arith.constant 0 : i32
    %c0_i32_0 = arith.constant 0 : i32
    %c0_i32_1 = arith.constant 0 : i32
    return %c0_i32, %c0_i32_0 : i32, i32
  }
  func.func @transform_3(%arg0: i32) -> (i32, i32) {
    %c0_i32 = arith.constant 0 : i32
    %c0_i32_0 = arith.constant 0 : i32
    %c0_i32_1 = arith.constant 0 : i32
    return %c0_i32, %c0_i32_0 : i32, i32
  }
  func.func @transform_4(%arg0: i32) -> (i32, i32) {
    %c0_i32 = arith.constant 0 : i32
    %c0_i32_0 = arith.constant 0 : i32
    %c0_i32_1 = arith.constant 0 : i32
    return %c0_i32, %c0_i32_0 : i32, i32
  }
  func.func @transform_5(%arg0: i32) -> (i32, i32) {
    %c0_i32 = arith.constant 0 : i32
    %c0_i32_0 = arith.constant 0 : i32
    %c0_i32_1 = arith.constant 0 : i32
    return %c0_i32, %c0_i32_0 : i32, i32
  }
  func.func @transform_6(%arg0: i32) -> (i32, i32) {
    %c0_i32 = arith.constant 0 : i32
    %c0_i32_0 = arith.constant 0 : i32
    %c0_i32_1 = arith.constant 0 : i32
    return %c0_i32, %c0_i32_0 : i32, i32
  }
  func.func @transform_7(%arg0: i32) -> (i32, i32) {
    %c0_i32 = arith.constant 0 : i32
    %c0_i32_0 = arith.constant 0 : i32
    %c0_i32_1 = arith.constant 0 : i32
    return %c0_i32, %c0_i32_0 : i32, i32
  }
  func.func @transform_8(%arg0: i32) -> (i32, i32) {
    %c0_i32 = arith.constant 0 : i32
    %c0_i32_0 = arith.constant 0 : i32
    %c0_i32_1 = arith.constant 0 : i32
    return %c0_i32, %c0_i32_0 : i32, i32
  }
  func.func @transform_9(%arg0: i32) -> (i32, i32) {
    %c0_i32 = arith.constant 0 : i32
    %c0_i32_0 = arith.constant 0 : i32
    %c0_i32_1 = arith.constant 0 : i32
    return %c0_i32, %c0_i32_0 : i32, i32
  }
  func.func @transform_10(%arg0: i32) -> (i32, i32) {
    %c0_i32 = arith.constant 0 : i32
    %c0_i32_0 = arith.constant 0 : i32
    %c0_i32_1 = arith.constant 0 : i32
    return %c0_i32, %c0_i32_0 : i32, i32
  }
  func.func @transform_11(%arg0: i32) -> (i32, i32) {
    %c0_i32 = arith.constant 0 : i32
    %c0_i32_0 = arith.constant 0 : i32
    %c0_i32_1 = arith.constant 0 : i32
    return %c0_i32, %c0_i32_0 : i32, i32
  }
}

</mosaic_0001>

<llo_original>
// kernel: gat_anomaly_detector.1
$region0: #{gat_anomaly_detector.1}
  #allocation0 [shape = 'u32[]', space=smem, size = 0x4, offset = 0x4, fixed_abs, tag = 'smem constant byte address 0x4 - core index']
  #allocation1 [shape = 'u32[72,128]{1,0:T(1,128)}', space=vmem, size = 0x9000, scoped, tag = 'internal scratch']
  %s0 = inlined_call_operand.vmem [shape: f32[128,128], index: 0, kind: input, shape index: {}]
  %s1 = inlined_call_operand.vmem [shape: bf16[128,128], index: 1, kind: input, shape index: {}]
  %s2 = inlined_call_operand.vmem [shape: bf16[128,128], index: 2, kind: input, shape index: {}]
  %s3 = inlined_call_operand.vmem [shape: bf16[8,128], index: 3, kind: input, shape index: {}]
  %s4 = inlined_call_operand.vmem [shape: bf16[8,128], index: 4, kind: input, shape index: {}]
  %s5 = inlined_call_operand.vmem [shape: f32[1,128], index: 5, kind: input, shape index: {}]
  %s6 = inlined_call_operand.vmem [shape: bf16[128,128], index: 6, kind: input, shape index: {}]
  %s7 = inlined_call_operand.vmem [shape: bf16[8,128], index: 7, kind: input, shape index: {}]
  %s8 = inlined_call_operand.vmem [shape: bf16[8,128], index: 8, kind: input, shape index: {}]
  %s9 = inlined_call_operand.vmem [shape: f32[1,128], index: 9, kind: input, shape index: {}]
  %s10 = inlined_call_operand.vmem [shape: f32[128,128], index: 10, kind: output, shape index: {0}]
  %s11 = inlined_call_operand.hbm [shape: f32[1,1], index: 11, kind: output, shape index: {1}]
  %12 = xla_tuple %s10, %s11
  %s13 = sld [smem:[#allocation0]]
  $region58: #{gat_anomaly_detector.1} parent=0
    _
  %s15 = ssub.s32 1, %s13
  %s16 = scalar_select 0, %s15, %s13
  $region1: #{gat_anomaly_detector.1} parent=0
    #allocation2 [shape = 'u8[512]{0}', space=smem, size = 0x200, scoped, tag = 'output window, operand 1, single buffered']
    #allocation3 [shape = 's32[1]{0}', space=sflag, size = 0x4, scoped, tag = 'scoped memory for gat_anomaly_detector.1']
    %17 = vsyncpa [#allocation3], 0
    // Predicated region
    $region2: #{gat_anomaly_detector.1} parent=1 // pred_check
      _
    $region3: #{gat_anomaly_detector.1} parent=1 // pred_check_branch
      %19 = sbr.rel (0) target = $region5
    $region4: #{gat_anomaly_detector.1} parent=1 // pred_region
      _
    $region5: #{gat_anomaly_detector.1} parent=1 // pred_fallthru
      _
    // Predicated region
    $region6: #{gat_anomaly_detector.1} parent=1 // pred_check
      _
    $region7: #{gat_anomaly_detector.1} parent=1 // pred_check_branch
      %21 = sbr.rel (0) target = $region9
    $region8: #{gat_anomaly_detector.1} parent=1 // pred_region
      _
    $region9: #{gat_anomaly_detector.1} parent=1 // pred_fallthru
      _
    // Predicated region
    $region10: #{gat_anomaly_detector.1} parent=1 // pred_check
      _
    $region11: #{gat_anomaly_detector.1} parent=1 // pred_check_branch
      %23 = sbr.rel (0) target = $region13
    $region12: #{gat_anomaly_detector.1} parent=1 // pred_region
      _
    $region13: #{gat_anomaly_detector.1} parent=1 // pred_fallthru
      _
    // Predicated region
    $region14: #{gat_anomaly_detector.1} parent=1 // pred_check
      _
    $region15: #{gat_anomaly_detector.1} parent=1 // pred_check_branch
      %25 = sbr.rel (0) target = $region17
    $region16: #{gat_anomaly_detector.1} parent=1 // pred_region
      _
    $region17: #{gat_anomaly_detector.1} parent=1 // pred_fallthru
      _
    // Predicated region
    $region18: #{gat_anomaly_detector.1} parent=1 // pred_check
      _
    $region19: #{gat_anomaly_detector.1} parent=1 // pred_check_branch
      %27 = sbr.rel (0) target = $region21
    $region20: #{gat_anomaly_detector.1} parent=1 // pred_region
      _
    $region21: #{gat_anomaly_detector.1} parent=1 // pred_fallthru
      _
    // Predicated region
    $region22: #{gat_anomaly_detector.1} parent=1 // pred_check
      _
    $region23: #{gat_anomaly_detector.1} parent=1 // pred_check_branch
      %29 = sbr.rel (0) target = $region25
    $region24: #{gat_anomaly_detector.1} parent=1 // pred_region
      _
    $region25: #{gat_anomaly_detector.1} parent=1 // pred_fallthru
      _
    // Predicated region
    $region26: #{gat_anomaly_detector.1} parent=1 // pred_check
      _
    $region27: #{gat_anomaly_detector.1} parent=1 // pred_check_branch
      %31 = sbr.rel (0) target = $region29
    $region28: #{gat_anomaly_detector.1} parent=1 // pred_region
      _
    $region29: #{gat_anomaly_detector.1} parent=1 // pred_fallthru
      _
    // Predicated region
    $region30: #{gat_anomaly_detector.1} parent=1 // pred_check
      _
    $region31: #{gat_anomaly_detector.1} parent=1 // pred_check_branch
      %33 = sbr.rel (0) target = $region33
    $region32: #{gat_anomaly_detector.1} parent=1 // pred_region
      _
    $region33: #{gat_anomaly_detector.1} parent=1 // pred_fallthru
      _
    // Predicated region
    $region34: #{gat_anomaly_detector.1} parent=1 // pred_check
      _
    $region35: #{gat_anomaly_detector.1} parent=1 // pred_check_branch
      %35 = sbr.rel (0) target = $region37
    $region36: #{gat_anomaly_detector.1} parent=1 // pred_region
      _
    $region37: #{gat_anomaly_detector.1} parent=1 // pred_fallthru
      _
    // Predicated region
    $region38: #{gat_anomaly_detector.1} parent=1 // pred_check
      _
    $region39: #{gat_anomaly_detector.1} parent=1 // pred_check_branch
      %37 = sbr.rel (0) target = $region41
    $region40: #{gat_anomaly_detector.1} parent=1 // pred_region
      _
    $region41: #{gat_anomaly_detector.1} parent=1 // pred_fallthru
      _
    %v39 = vld [vmem:[%s0] sm:$0xff]
    %v40 = vld [vmem:[%s0 + $0x8] sm:$0xff]
    %v41 = vld [vmem:[%s0 + $0x10] sm:$0xff]
    %v42 = vld [vmem:[%s0 + $0x18] sm:$0xff]
    %v43 = vld [vmem:[%s0 + $0x20] sm:$0xff]
    %v44 = vld [vmem:[%s0 + $0x28] sm:$0xff]
    %v45 = vld [vmem:[%s0 + $0x30] sm:$0xff]
    %v46 = vld [vmem:[%s0 + $0x38] sm:$0xff]
    %v47 = vld [vmem:[%s0 + $0x40] sm:$0xff]
    %v48 = vld [vmem:[%s0 + $0x48] sm:$0xff]
    %v49 = vld [vmem:[%s0 + $0x50] sm:$0xff]
    %v50 = vld [vmem:[%s0 + $0x58] sm:$0xff]
    %v51 = vld [vmem:[%s0 + $0x60] sm:$0xff]
    %v52 = vld [vmem:[%s0 + $0x68] sm:$0xff]
    %v53 = vld [vmem:[%s0 + $0x70] sm:$0xff]
    %v54 = vld [vmem:[%s0 + $0x78] sm:$0xff]
    %v55 = vpack.c.bf16 %v40, %v39
    %v56 = vpack.c.bf16 %v42, %v41
    %v57 = vpack.c.bf16 %v44, %v43
    %v58 = vpack.c.bf16 %v46, %v45
    %v59 = vpack.c.bf16 %v48, %v47
    %v60 = vpack.c.bf16 %v50, %v49
    %v61 = vpack.c.bf16 %v52, %v51
    %v62 = vpack.c.bf16 %v54, %v53
    %v63 = vld [vmem:[%s2] sm:$0xf]
    %v64 = vld [vmem:[%s2 + $0x4] sm:$0xf]
    %v65 = vld [vmem:[%s2 + $0x8] sm:$0xf]
    %v66 = vld [vmem:[%s2 + $0xc] sm:$0xf]
    %v67 = vld [vmem:[%s2 + $0x10] sm:$0xf]
    %v68 = vld [vmem:[%s2 + $0x14] sm:$0xf]
    %v69 = vld [vmem:[%s2 + $0x18] sm:$0xf]
    %v70 = vld [vmem:[%s2 + $0x1c] sm:$0xf]
    %v71 = vld [vmem:[%s2 + $0x20] sm:$0xf]
    %v72 = vld [vmem:[%s2 + $0x24] sm:$0xf]
    %v73 = vld [vmem:[%s2 + $0x28] sm:$0xf]
    %v74 = vld [vmem:[%s2 + $0x2c] sm:$0xf]
    %v75 = vld [vmem:[%s2 + $0x30] sm:$0xf]
    %v76 = vld [vmem:[%s2 + $0x34] sm:$0xf]
    %v77 = vld [vmem:[%s2 + $0x38] sm:$0xf]
    %v78 = vld [vmem:[%s2 + $0x3c] sm:$0xf]
    %v95 = vunpack.c.l.b16 %v63
    %v96 = vunpack.c.l.b16 %v64
    %v97 = vunpack.c.l.b16 %v65
    %v98 = vunpack.c.l.b16 %v66
    %v99 = vunpack.c.l.b16 %v67
    %v100 = vunpack.c.l.b16 %v68
    %v101 = vunpack.c.l.b16 %v69
    %v102 = vunpack.c.l.b16 %v70
    %v103 = vunpack.c.l.b16 %v71
    %v104 = vunpack.c.l.b16 %v72
    %v105 = vunpack.c.l.b16 %v73
    %v106 = vunpack.c.l.b16 %v74
    %v107 = vunpack.c.l.b16 %v75
    %v108 = vunpack.c.l.b16 %v76
    %v109 = vunpack.c.l.b16 %v77
    %v110 = vunpack.c.l.b16 %v78
    %v111 = vpack.c.b16 %v96, %v95
    %v112 = vpack.c.b16 %v98, %v97
    %v113 = vpack.c.b16 %v100, %v99
    %v114 = vpack.c.b16 %v102, %v101
    %v115 = vpack.c.b16 %v104, %v103
    %v116 = vpack.c.b16 %v106, %v105
    %v117 = vpack.c.b16 %v108, %v107
    %v118 = vpack.c.b16 %v110, %v109
    %127 = vmatpush.bf16.msra.mxu0 %v118
    %128 = vmatpush.bf16.msra.mxu0 %v117
    %129 = vmatpush.bf16.msra.mxu0 %v116
    %130 = vmatpush.bf16.msra.mxu0 %v115
    %131 = vmatpush.bf16.msra.mxu0 %v114
    %132 = vmatpush.bf16.msra.mxu0 %v113
    %133 = vmatpush.bf16.msra.mxu0 %v112
    %134 = vmatpush.bf16.msra.mxu0 %v111
    %135 = vmatmul.bf16.gmra.mxu0 %v55
    %v136 = vpop.f32.mrf.mxu0
    %v137 = vadd.f32 0.0, %v136
    %v138 = vpop.f32.mrf.mxu0
    %v139 = vadd.f32 0.0, %v138
    %140 = vmatmul.bf16.gmra.mxu0 %v56
    %v141 = vpop.f32.mrf.mxu0
    %v142 = vadd.f32 0.0, %v141
    %v143 = vpop.f32.mrf.mxu0
    %v144 = vadd.f32 0.0, %v143
    %145 = vmatmul.bf16.gmra.mxu0 %v57
    %v146 = vpop.f32.mrf.mxu0
    %v147 = vadd.f32 0.0, %v146
    %v148 = vpop.f32.mrf.mxu0
    %v149 = vadd.f32 0.0, %v148
    %150 = vmatmul.bf16.gmra.mxu0 %v58
    %v151 = vpop.f32.mrf.mxu0
    %v152 = vadd.f32 0.0, %v151
    %v153 = vpop.f32.mrf.mxu0
    %v154 = vadd.f32 0.0, %v153
    %155 = vmatmul.bf16.gmra.mxu0 %v59
    %v156 = vpop.f32.mrf.mxu0
    %v157 = vadd.f32 0.0, %v156
    %v158 = vpop.f32.mrf.mxu0
    %v159 = vadd.f32 0.0, %v158
    %160 = vmatmul.bf16.gmra.mxu0 %v60
    %v161 = vpop.f32.mrf.mxu0
    %v162 = vadd.f32 0.0, %v161
    %v163 = vpop.f32.mrf.mxu0
    %v164 = vadd.f32 0.0, %v163
    %165 = vmatmul.bf16.gmra.mxu0 %v61
    %v166 = vpop.f32.mrf.mxu0
    %v167 = vadd.f32 0.0, %v166
    %v168 = vpop.f32.mrf.mxu0
    %v169 = vadd.f32 0.0, %v168
    %170 = vmatmul.bf16.gmra.mxu0 %v62
    %v171 = vpop.f32.mrf.mxu0
    %v172 = vadd.f32 0.0, %v171
    %v173 = vpop.f32.mrf.mxu0
    %v174 = vadd.f32 0.0, %v173
    %175 = vdwg.mxu0
    %v176 = vpack.c.bf16 %v139, %v137
    %v177 = vpack.c.bf16 %v144, %v142
    %v178 = vpack.c.bf16 %v149, %v147
    %v179 = vpack.c.bf16 %v154, %v152
    %v180 = vpack.c.bf16 %v159, %v157
    %v181 = vpack.c.bf16 %v164, %v162
    %v182 = vpack.c.bf16 %v169, %v167
    %v183 = vpack.c.bf16 %v174, %v172
    %v184 = vld [vmem:[%s3] sm:$0xf]
    %v185 = vld [vmem:[%s4] sm:$0xf]
    %186 = vmatpush.bf16.xpose.msra.mxu0 0
    %187 = vmatpush.bf16.xpose.msra.mxu0 0
    %188 = vmatpush.bf16.xpose.msra.mxu0 0
    %189 = vmatpush.bf16.xpose.msra.mxu0 0
    %190 = vmatpush.bf16.xpose.msra.mxu0 0
    %191 = vmatpush.bf16.xpose.msra.mxu0 0
    %192 = vmatpush.bf16.xpose.msra.mxu0 0
    %193 = vmatpush.bf16.xpose.msra.mxu0 %v184
    %194 = vmatmul.bf16.gmra.mxu0 %v176
    %v195 = vpop.f32.mrf.mxu0
    %v196 = vadd.f32 0.0, %v195
    %v197 = vpop.f32.mrf.mxu0
    %v198 = vadd.f32 0.0, %v197
    %199 = vmatmul.bf16.gmra.mxu0 %v177
    %v200 = vpop.f32.mrf.mxu0
    %v201 = vadd.f32 0.0, %v200
    %v202 = vpop.f32.mrf.mxu0
    %v203 = vadd.f32 0.0, %v202
    %204 = vmatmul.bf16.gmra.mxu0 %v178
    %v205 = vpop.f32.mrf.mxu0
    %v206 = vadd.f32 0.0, %v205
    %v207 = vpop.f32.mrf.mxu0
    %v208 = vadd.f32 0.0, %v207
    %209 = vmatmul.bf16.gmra.mxu0 %v179
    %v210 = vpop.f32.mrf.mxu0
    %v211 = vadd.f32 0.0, %v210
    %v212 = vpop.f32.mrf.mxu0
    %v213 = vadd.f32 0.0, %v212
    %214 = vmatmul.bf16.gmra.mxu0 %v180
    %v215 = vpop.f32.mrf.mxu0
    %v216 = vadd.f32 0.0, %v215
    %v217 = vpop.f32.mrf.mxu0
    %v218 = vadd.f32 0.0, %v217
    %219 = vmatmul.bf16.gmra.mxu0 %v181
    %v220 = vpop.f32.mrf.mxu0
    %v221 = vadd.f32 0.0, %v220
    %v222 = vpop.f32.mrf.mxu0
    %v223 = vadd.f32 0.0, %v222
    %224 = vmatmul.bf16.gmra.mxu0 %v182
    %v225 = vpop.f32.mrf.mxu0
    %v226 = vadd.f32 0.0, %v225
    %v227 = vpop.f32.mrf.mxu0
    %v228 = vadd.f32 0.0, %v227
    %229 = vmatmul.bf16.gmra.mxu0 %v183
    %v230 = vpop.f32.mrf.mxu0
    %v231 = vadd.f32 0.0, %v230
    %v232 = vpop.f32.mrf.mxu0
    %v233 = vadd.f32 0.0, %v232
    %234 = vdwg.mxu0
    %235 = vmatpush.bf16.xpose.msra.mxu0 %v183
    %236 = vmatpush.bf16.xpose.msra.mxu0 %v182
    %237 = vmatpush.bf16.xpose.msra.mxu0 %v181
    %238 = vmatpush.bf16.xpose.msra.mxu0 %v180
    %239 = vmatpush.bf16.xpose.msra.mxu0 %v179
    %240 = vmatpush.bf16.xpose.msra.mxu0 %v178
    %241 = vmatpush.bf16.xpose.msra.mxu0 %v177
    %242 = vmatpush.bf16.xpose.msra.mxu0 %v176
    %243 = vmatmul.bf16.gmra.mxu0 %v185
    %v244 = vpop.f32.mrf.mxu0
    %v245 = vadd.f32 0.0, %v244
    %v246 = vpop.f32.mrf.mxu0
    %247 = vdwg.mxu0
    %v248 = vld [vmem:[%s1] sm:$0xf]
    %v249 = vld [vmem:[%s1 + $0x4] sm:$0xf]
    %v250 = vld [vmem:[%s1 + $0x8] sm:$0xf]
    %v251 = vld [vmem:[%s1 + $0xc] sm:$0xf]
    %v252 = vld [vmem:[%s1 + $0x10] sm:$0xf]
    %v253 = vld [vmem:[%s1 + $0x14] sm:$0xf]
    %v254 = vld [vmem:[%s1 + $0x18] sm:$0xf]
    %v255 = vld [vmem:[%s1 + $0x1c] sm:$0xf]
    %v256 = vld [vmem:[%s1 + $0x20] sm:$0xf]
    %v257 = vld [vmem:[%s1 + $0x24] sm:$0xf]
    %v258 = vld [vmem:[%s1 + $0x28] sm:$0xf]
    %v259 = vld [vmem:[%s1 + $0x2c] sm:$0xf]
    %v260 = vld [vmem:[%s1 + $0x30] sm:$0xf]
    %v261 = vld [vmem:[%s1 + $0x34] sm:$0xf]
    %v262 = vld [vmem:[%s1 + $0x38] sm:$0xf]
    %v263 = vld [vmem:[%s1 + $0x3c] sm:$0xf]
    %265 = vset.pattern.permute.xlu0 0
    %266 = vperm.xlu0 %265, %v196
    %v267 = vpop.permute.xlu0 %266
    %270 = vset.pattern.permute.xlu0 0
    %271 = vperm.xlu0 %270, %v198
    %v272 = vpop.permute.xlu0 %271
    %275 = vset.pattern.permute.xlu0 0
    %276 = vperm.xlu0 %275, %v201
    %v277 = vpop.permute.xlu0 %276
    %280 = vset.pattern.permute.xlu0 0
    %281 = vperm.xlu0 %280, %v203
    %v282 = vpop.permute.xlu0 %281
    %285 = vset.pattern.permute.xlu0 0
    %286 = vperm.xlu0 %285, %v206
    %v287 = vpop.permute.xlu0 %286
    %290 = vset.pattern.permute.xlu0 0
    %291 = vperm.xlu0 %290, %v208
    %v292 = vpop.permute.xlu0 %291
    %295 = vset.pattern.permute.xlu0 0
    %296 = vperm.xlu0 %295, %v211
    %v297 = vpop.permute.xlu0 %296
    %300 = vset.pattern.permute.xlu0 0
    %301 = vperm.xlu0 %300, %v213
    %v302 = vpop.permute.xlu0 %301
    %305 = vset.pattern.permute.xlu0 0
    %306 = vperm.xlu0 %305, %v216
    %v307 = vpop.permute.xlu0 %306
    %310 = vset.pattern.permute.xlu0 0
    %311 = vperm.xlu0 %310, %v218
    %v312 = vpop.permute.xlu0 %311
    %315 = vset.pattern.permute.xlu0 0
    %316 = vperm.xlu0 %315, %v221
    %v317 = vpop.permute.xlu0 %316
    %320 = vset.pattern.permute.xlu0 0
    %321 = vperm.xlu0 %320, %v223
    %v322 = vpop.permute.xlu0 %321
    %325 = vset.pattern.permute.xlu0 0
    %326 = vperm.xlu0 %325, %v226
    %v327 = vpop.permute.xlu0 %326
    %330 = vset.pattern.permute.xlu0 0
    %331 = vperm.xlu0 %330, %v228
    %v332 = vpop.permute.xlu0 %331
    %335 = vset.pattern.permute.xlu0 0
    %336 = vperm.xlu0 %335, %v231
    %v337 = vpop.permute.xlu0 %336
    %340 = vset.pattern.permute.xlu0 0
    %341 = vperm.xlu0 %340, %v233
    %v342 = vpop.permute.xlu0 %341
    %v344 = vperm.slane %v245, 0
    %v345 = vadd.f32 %v267, %v344
    %v346 = vadd.f32 %v272, %v344
    %v347 = vadd.f32 %v277, %v344
    %v348 = vadd.f32 %v282, %v344
    %v349 = vadd.f32 %v287, %v344
    %v350 = vadd.f32 %v292, %v344
    %v351 = vadd.f32 %v297, %v344
    %v352 = vadd.f32 %v302, %v344
    %v353 = vadd.f32 %v307, %v344
    %v354 = vadd.f32 %v312, %v344
    %v355 = vadd.f32 %v317, %v344
    %v356 = vadd.f32 %v322, %v344
    %v357 = vadd.f32 %v327, %v344
    %v358 = vadd.f32 %v332, %v344
    %v359 = vadd.f32 %v337, %v344
    %v360 = vadd.f32 %v342, %v344
    %v361 = vmul.f32 %v345, 0.2
    %v362 = vmul.f32 %v346, 0.2
    %v363 = vmul.f32 %v347, 0.2
    %v364 = vmul.f32 %v348, 0.2
    %v365 = vmul.f32 %v349, 0.2
    %v366 = vmul.f32 %v350, 0.2
    %v367 = vmul.f32 %v351, 0.2
    %v368 = vmul.f32 %v352, 0.2
    %v369 = vmul.f32 %v353, 0.2
    %v370 = vmul.f32 %v354, 0.2
    %v371 = vmul.f32 %v355, 0.2
    %v372 = vmul.f32 %v356, 0.2
    %v373 = vmul.f32 %v357, 0.2
    %v374 = vmul.f32 %v358, 0.2
    %v375 = vmul.f32 %v359, 0.2
    %v376 = vmul.f32 %v360, 0.2
    %v377 = vmax.f32 %v345, %v361
    %v378 = vmax.f32 %v346, %v362
    %v379 = vmax.f32 %v347, %v363
    %v380 = vmax.f32 %v348, %v364
    %v381 = vmax.f32 %v349, %v365
    %v382 = vmax.f32 %v350, %v366
    %v383 = vmax.f32 %v351, %v367
    %v384 = vmax.f32 %v352, %v368
    %v385 = vmax.f32 %v353, %v369
    %v386 = vmax.f32 %v354, %v370
    %v387 = vmax.f32 %v355, %v371
    %v388 = vmax.f32 %v356, %v372
    %v389 = vmax.f32 %v357, %v373
    %v390 = vmax.f32 %v358, %v374
    %v391 = vmax.f32 %v359, %v375
    %v392 = vmax.f32 %v360, %v376
    %v393 = vunpack.c.l.bf16 %v248
    %v394 = vunpack.c.l.bf16 %v249
    %v395 = vunpack.c.l.bf16 %v250
    %v396 = vunpack.c.l.bf16 %v251
    %v397 = vunpack.c.l.bf16 %v252
    %v398 = vunpack.c.l.bf16 %v253
    %v399 = vunpack.c.l.bf16 %v254
    %v400 = vunpack.c.l.bf16 %v255
    %v401 = vunpack.c.l.bf16 %v256
    %v402 = vunpack.c.l.bf16 %v257
    %v403 = vunpack.c.l.bf16 %v258
    %v404 = vunpack.c.l.bf16 %v259
    %v405 = vunpack.c.l.bf16 %v260
    %v406 = vunpack.c.l.bf16 %v261
    %v407 = vunpack.c.l.bf16 %v262
    %v408 = vunpack.c.l.bf16 %v263
    %v409 = vadd.f32 %v377, %v393
    %v410 = vadd.f32 %v378, %v394
    %v411 = vadd.f32 %v379, %v395
    %v412 = vadd.f32 %v380, %v396
    %v413 = vadd.f32 %v381, %v397
    %v414 = vadd.f32 %v382, %v398
    %v415 = vadd.f32 %v383, %v399
    %v416 = vadd.f32 %v384, %v400
    %v417 = vadd.f32 %v385, %v401
    %v418 = vadd.f32 %v386, %v402
    %v419 = vadd.f32 %v387, %v403
    %v420 = vadd.f32 %v388, %v404
    %v421 = vadd.f32 %v389, %v405
    %v422 = vadd.f32 %v390, %v406
    %v423 = vadd.f32 %v391, %v407
    %v424 = vadd.f32 %v392, %v408
    %425 = vmax.xlane.f32.xlu0 %v409
    %v426 = vpop.xlane.xlu0 %425
    %427 = vmax.xlane.f32.xlu0 %v410
    %v428 = vpop.xlane.xlu0 %427
    %429 = vmax.xlane.f32.xlu0 %v411
    %v430 = vpop.xlane.xlu0 %429
    %431 = vmax.xlane.f32.xlu0 %v412
    %v432 = vpop.xlane.xlu0 %431
    %433 = vmax.xlane.f32.xlu0 %v413
    %v434 = vpop.xlane.xlu0 %433
    %435 = vmax.xlane.f32.xlu0 %v414
    %v436 = vpop.xlane.xlu0 %435
    %437 = vmax.xlane.f32.xlu0 %v415
    %v438 = vpop.xlane.xlu0 %437
    %439 = vmax.xlane.f32.xlu0 %v416
    %v440 = vpop.xlane.xlu0 %439
    %441 = vmax.xlane.f32.xlu0 %v417
    %v442 = vpop.xlane.xlu0 %441
    %443 = vmax.xlane.f32.xlu0 %v418
    %v444 = vpop.xlane.xlu0 %443
    %445 = vmax.xlane.f32.xlu0 %v419
    %v446 = vpop.xlane.xlu0 %445
    %447 = vmax.xlane.f32.xlu0 %v420
    %v448 = vpop.xlane.xlu0 %447
    %449 = vmax.xlane.f32.xlu0 %v421
    %v450 = vpop.xlane.xlu0 %449
    %451 = vmax.xlane.f32.xlu0 %v422
    %v452 = vpop.xlane.xlu0 %451
    %453 = vmax.xlane.f32.xlu0 %v423
    %v454 = vpop.xlane.xlu0 %453
    %455 = vmax.xlane.f32.xlu0 %v424
    %v456 = vpop.xlane.xlu0 %455
    %v457 = vsub.f32 %v409, %v426
    %v458 = vsub.f32 %v410, %v428
    %v459 = vsub.f32 %v411, %v430
    %v460 = vsub.f32 %v412, %v432
    %v461 = vsub.f32 %v413, %v434
    %v462 = vsub.f32 %v414, %v436
    %v463 = vsub.f32 %v415, %v438
    %v464 = vsub.f32 %v416, %v440
    %v465 = vsub.f32 %v417, %v442
    %v466 = vsub.f32 %v418, %v444
    %v467 = vsub.f32 %v419, %v446
    %v468 = vsub.f32 %v420, %v448
    %v469 = vsub.f32 %v421, %v450
    %v470 = vsub.f32 %v422, %v452
    %v471 = vsub.f32 %v423, %v454
    %v472 = vsub.f32 %v424, %v456
    %v473 = vmul.f32 %v457, 1.442695
    %v474 = vpow.pop %v473
    %v475 = vmul.f32 %v458, 1.442695
    %v476 = vpow.pop %v475
    %v477 = vmul.f32 %v459, 1.442695
    %v478 = vpow.pop %v477
    %v479 = vmul.f32 %v460, 1.442695
    %v480 = vpow.pop %v479
    %v481 = vmul.f32 %v461, 1.442695
    %v482 = vpow.pop %v481
    %v483 = vmul.f32 %v462, 1.442695
    %v484 = vpow.pop %v483
    %v485 = vmul.f32 %v463, 1.442695
    %v486 = vpow.pop %v485
    %v487 = vmul.f32 %v464, 1.442695
    %v488 = vpow.pop %v487
    %v489 = vmul.f32 %v465, 1.442695
    %v490 = vpow.pop %v489
    %v491 = vmul.f32 %v466, 1.442695
    %v492 = vpow.pop %v491
    %v493 = vmul.f32 %v467, 1.442695
    %v494 = vpow.pop %v493
    %v495 = vmul.f32 %v468, 1.442695
    %v496 = vpow.pop %v495
    %v497 = vmul.f32 %v469, 1.442695
    %v498 = vpow.pop %v497
    %v499 = vmul.f32 %v470, 1.442695
    %v500 = vpow.pop %v499
    %v501 = vmul.f32 %v471, 1.442695
    %v502 = vpow.pop %v501
    %v503 = vmul.f32 %v472, 1.442695
    %v504 = vpow.pop %v503
    %505 = vadd.xlane.f32.xlu0 %v474
    %v506 = vpop.xlane.xlu0 %505
    %507 = vadd.xlane.f32.xlu0 %v476
    %v508 = vpop.xlane.xlu0 %507
    %509 = vadd.xlane.f32.xlu0 %v478
    %v510 = vpop.xlane.xlu0 %509
    %511 = vadd.xlane.f32.xlu0 %v480
    %v512 = vpop.xlane.xlu0 %511
    %513 = vadd.xlane.f32.xlu0 %v482
    %v514 = vpop.xlane.xlu0 %513
    %515 = vadd.xlane.f32.xlu0 %v484
    %v516 = vpop.xlane.xlu0 %515
    %517 = vadd.xlane.f32.xlu0 %v486
    %v518 = vpop.xlane.xlu0 %517
    %519 = vadd.xlane.f32.xlu0 %v488
    %v520 = vpop.xlane.xlu0 %519
    %521 = vadd.xlane.f32.xlu0 %v490
    %v522 = vpop.xlane.xlu0 %521
    %523 = vadd.xlane.f32.xlu0 %v492
    %v524 = vpop.xlane.xlu0 %523
    %525 = vadd.xlane.f32.xlu0 %v494
    %v526 = vpop.xlane.xlu0 %525
    %527 = vadd.xlane.f32.xlu0 %v496
    %v528 = vpop.xlane.xlu0 %527
    %529 = vadd.xlane.f32.xlu0 %v498
    %v530 = vpop.xlane.xlu0 %529
    %531 = vadd.xlane.f32.xlu0 %v500
    %v532 = vpop.xlane.xlu0 %531
    %533 = vadd.xlane.f32.xlu0 %v502
    %v534 = vpop.xlane.xlu0 %533
    %535 = vadd.xlane.f32.xlu0 %v504
    %v536 = vpop.xlane.xlu0 %535
    %v537 = vpack.c.bf16 %v476, %v474
    %v538 = vpack.c.bf16 %v480, %v478
    %v539 = vpack.c.bf16 %v484, %v482
    %v540 = vpack.c.bf16 %v488, %v486
    %v541 = vpack.c.bf16 %v492, %v490
    %v542 = vpack.c.bf16 %v496, %v494
    %v543 = vpack.c.bf16 %v500, %v498
    %v544 = vpack.c.bf16 %v504, %v502
    %545 = vmatpush.bf16.msra.mxu0 %v183
    %546 = vmatpush.bf16.msra.mxu0 %v182
    %547 = vmatpush.bf16.msra.mxu0 %v181
    %548 = vmatpush.bf16.msra.mxu0 %v180
    %549 = vmatpush.bf16.msra.mxu0 %v179
    %550 = vmatpush.bf16.msra.mxu0 %v178
    %551 = vmatpush.bf16.msra.mxu0 %v177
    %552 = vmatpush.bf16.msra.mxu0 %v176
    %553 = vmatmul.bf16.gmra.mxu0 %v537
    %v554 = vpop.f32.mrf.mxu0
    %v555 = vadd.f32 0.0, %v554
    %v556 = vpop.f32.mrf.mxu0
    %v557 = vadd.f32 0.0, %v556
    %558 = vmatmul.bf16.gmra.mxu0 %v538
    %v559 = vpop.f32.mrf.mxu0
    %v560 = vadd.f32 0.0, %v559
    %v561 = vpop.f32.mrf.mxu0
    %v562 = vadd.f32 0.0, %v561
    %563 = vmatmul.bf16.gmra.mxu0 %v539
    %v564 = vpop.f32.mrf.mxu0
    %v565 = vadd.f32 0.0, %v564
    %v566 = vpop.f32.mrf.mxu0
    %v567 = vadd.f32 0.0, %v566
    %568 = vmatmul.bf16.gmra.mxu0 %v540
    %v569 = vpop.f32.mrf.mxu0
    %v570 = vadd.f32 0.0, %v569
    %v571 = vpop.f32.mrf.mxu0
    %v572 = vadd.f32 0.0, %v571
    %573 = vmatmul.bf16.gmra.mxu0 %v541
    %v574 = vpop.f32.mrf.mxu0
    %v575 = vadd.f32 0.0, %v574
    %v576 = vpop.f32.mrf.mxu0
    %v577 = vadd.f32 0.0, %v576
    %578 = vmatmul.bf16.gmra.mxu0 %v542
    %v579 = vpop.f32.mrf.mxu0
    %v580 = vadd.f32 0.0, %v579
    %v581 = vpop.f32.mrf.mxu0
    %v582 = vadd.f32 0.0, %v581
    %583 = vmatmul.bf16.gmra.mxu0 %v543
    %v584 = vpop.f32.mrf.mxu0
    %v585 = vadd.f32 0.0, %v584
    %v586 = vpop.f32.mrf.mxu0
    %v587 = vadd.f32 0.0, %v586
    %588 = vmatmul.bf16.gmra.mxu0 %v544
    %v589 = vpop.f32.mrf.mxu0
    %v590 = vadd.f32 0.0, %v589
    %v591 = vpop.f32.mrf.mxu0
    %v592 = vadd.f32 0.0, %v591
    %593 = vdwg.mxu0
    %v594 = vrcp.pop %v506
    %v595 = vrcp.pop %v508
    %v596 = vrcp.pop %v510
    %v597 = vrcp.pop %v512
    %v598 = vrcp.pop %v514
    %v599 = vrcp.pop %v516
    %v600 = vrcp.pop %v518
    %v601 = vrcp.pop %v520
    %v602 = vrcp.pop %v522
    %v603 = vrcp.pop %v524
    %v604 = vrcp.pop %v526
    %v605 = vrcp.pop %v528
    %v606 = vrcp.pop %v530
    %v607 = vrcp.pop %v532
    %v608 = vrcp.pop %v534
    %v609 = vrcp.pop %v536
    %v610 = vmul.f32 %v555, %v594
    %v611 = vmul.f32 %v557, %v595
    %v612 = vmul.f32 %v560, %v596
    %v613 = vmul.f32 %v562, %v597
    %v614 = vmul.f32 %v565, %v598
    %v615 = vmul.f32 %v567, %v599
    %v616 = vmul.f32 %v570, %v600
    %v617 = vmul.f32 %v572, %v601
    %v618 = vmul.f32 %v575, %v602
    %v619 = vmul.f32 %v577, %v603
    %v620 = vmul.f32 %v580, %v604
    %v621 = vmul.f32 %v582, %v605
    %v622 = vmul.f32 %v585, %v606
    %v623 = vmul.f32 %v587, %v607
    %v624 = vmul.f32 %v590, %v608
    %v625 = vmul.f32 %v592, %v609
    %v626 = vld [vmem:[%s5] sm:$0x1]
    %v628 = vperm.slane %v626, 0
    %v630 = vadd.f32 %v610, %v628
    %v631 = vadd.f32 %v611, %v628
    %v632 = vadd.f32 %v612, %v628
    %v633 = vadd.f32 %v613, %v628
    %v634 = vadd.f32 %v614, %v628
    %v635 = vadd.f32 %v615, %v628
    %v636 = vadd.f32 %v616, %v628
    %v637 = vadd.f32 %v617, %v628
    %v638 = vadd.f32 %v618, %v628
    %v639 = vadd.f32 %v619, %v628
    %v640 = vadd.f32 %v620, %v628
    %v641 = vadd.f32 %v621, %v628
    %v642 = vadd.f32 %v622, %v628
    %v643 = vadd.f32 %v623, %v628
    %v644 = vadd.f32 %v624, %v628
    %v645 = vadd.f32 %v625, %v628
    %vm646 = vcmp.gt.f32.partialorder %v630, 0.0
    %vm647 = vcmp.gt.f32.partialorder %v631, 0.0
    %vm648 = vcmp.gt.f32.partialorder %v632, 0.0
    %vm649 = vcmp.gt.f32.partialorder %v633, 0.0
    %vm650 = vcmp.gt.f32.partialorder %v634, 0.0
    %vm651 = vcmp.gt.f32.partialorder %v635, 0.0
    %vm652 = vcmp.gt.f32.partialorder %v636, 0.0
    %vm653 = vcmp.gt.f32.partialorder %v637, 0.0
    %vm654 = vcmp.gt.f32.partialorder %v638, 0.0
    %vm655 = vcmp.gt.f32.partialorder %v639, 0.0
    %vm656 = vcmp.gt.f32.partialorder %v640, 0.0
    %vm657 = vcmp.gt.f32.partialorder %v641, 0.0
    %vm658 = vcmp.gt.f32.partialorder %v642, 0.0
    %vm659 = vcmp.gt.f32.partialorder %v643, 0.0
    %vm660 = vcmp.gt.f32.partialorder %v644, 0.0
    %vm661 = vcmp.gt.f32.partialorder %v645, 0.0
    %v662 = vmul.f32 %v630, 1.442695
    %v663 = vpow.pop %v662
    %v664 = vmul.f32 %v631, 1.442695
    %v665 = vpow.pop %v664
    %v666 = vmul.f32 %v632, 1.442695
    %v667 = vpow.pop %v666
    %v668 = vmul.f32 %v633, 1.442695
    %v669 = vpow.pop %v668
    %v670 = vmul.f32 %v634, 1.442695
    %v671 = vpow.pop %v670
    %v672 = vmul.f32 %v635, 1.442695
    %v673 = vpow.pop %v672
    %v674 = vmul.f32 %v636, 1.442695
    %v675 = vpow.pop %v674
    %v676 = vmul.f32 %v637, 1.442695
    %v677 = vpow.pop %v676
    %v678 = vmul.f32 %v638, 1.442695
    %v679 = vpow.pop %v678
    %v680 = vmul.f32 %v639, 1.442695
    %v681 = vpow.pop %v680
    %v682 = vmul.f32 %v640, 1.442695
    %v683 = vpow.pop %v682
    %v684 = vmul.f32 %v641, 1.442695
    %v685 = vpow.pop %v684
    %v686 = vmul.f32 %v642, 1.442695
    %v687 = vpow.pop %v686
    %v688 = vmul.f32 %v643, 1.442695
    %v689 = vpow.pop %v688
    %v690 = vmul.f32 %v644, 1.442695
    %v691 = vpow.pop %v690
    %v692 = vmul.f32 %v645, 1.442695
    %v693 = vpow.pop %v692
    %v694 = vsub.f32 %v663, 1.0
    %v695 = vsub.f32 %v665, 1.0
    %v696 = vsub.f32 %v667, 1.0
    %v697 = vsub.f32 %v669, 1.0
    %v698 = vsub.f32 %v671, 1.0
    %v699 = vsub.f32 %v673, 1.0
    %v700 = vsub.f32 %v675, 1.0
    %v701 = vsub.f32 %v677, 1.0
    %v702 = vsub.f32 %v679, 1.0
    %v703 = vsub.f32 %v681, 1.0
    %v704 = vsub.f32 %v683, 1.0
    %v705 = vsub.f32 %v685, 1.0
    %v706 = vsub.f32 %v687, 1.0
    %v707 = vsub.f32 %v689, 1.0
    %v708 = vsub.f32 %v691, 1.0
    %v709 = vsub.f32 %v693, 1.0
    %v710 = vsel %vm646, %v630, %v694
    %v711 = vsel %vm647, %v631, %v695
    %v712 = vsel %vm648, %v632, %v696
    %v713 = vsel %vm649, %v633, %v697
    %v714 = vsel %vm650, %v634, %v698
    %v715 = vsel %vm651, %v635, %v699
    %v716 = vsel %vm652, %v636, %v700
    %v717 = vsel %vm653, %v637, %v701
    %v718 = vsel %vm654, %v638, %v702
    %v719 = vsel %vm655, %v639, %v703
    %v720 = vsel %vm656, %v640, %v704
    %v721 = vsel %vm657, %v641, %v705
    %v722 = vsel %vm658, %v642, %v706
    %v723 = vsel %vm659, %v643, %v707
    %v724 = vsel %vm660, %v644, %v708
    %v725 = vsel %vm661, %v645, %v709
    %v726 = vpack.c.bf16 %v711, %v710
    %v727 = vpack.c.bf16 %v713, %v712
    %v728 = vpack.c.bf16 %v715, %v714
    %v729 = vpack.c.bf16 %v717, %v716
    %v730 = vpack.c.bf16 %v719, %v718
    %v731 = vpack.c.bf16 %v721, %v720
    %v732 = vpack.c.bf16 %v723, %v722
    %v733 = vpack.c.bf16 %v725, %v724
    %v734 = vld [vmem:[%s6] sm:$0xf]
    %v735 = vld [vmem:[%s6 + $0x4] sm:$0xf]
    %v736 = vld [vmem:[%s6 + $0x8] sm:$0xf]
    %v737 = vld [vmem:[%s6 + $0xc] sm:$0xf]
    %v738 = vld [vmem:[%s6 + $0x10] sm:$0xf]
    %v739 = vld [vmem:[%s6 + $0x14] sm:$0xf]
    %v740 = vld [vmem:[%s6 + $0x18] sm:$0xf]
    %v741 = vld [vmem:[%s6 + $0x1c] sm:$0xf]
    %v742 = vld [vmem:[%s6 + $0x20] sm:$0xf]
    %v743 = vld [vmem:[%s6 + $0x24] sm:$0xf]
    %v744 = vld [vmem:[%s6 + $0x28] sm:$0xf]
    %v745 = vld [vmem:[%s6 + $0x2c] sm:$0xf]
    %v746 = vld [vmem:[%s6 + $0x30] sm:$0xf]
    %v747 = vld [vmem:[%s6 + $0x34] sm:$0xf]
    %v748 = vld [vmem:[%s6 + $0x38] sm:$0xf]
    %v749 = vld [vmem:[%s6 + $0x3c] sm:$0xf]
    %v766 = vunpack.c.l.b16 %v734
    %v767 = vunpack.c.l.b16 %v735
    %v768 = vunpack.c.l.b16 %v736
    %v769 = vunpack.c.l.b16 %v737
    %v770 = vunpack.c.l.b16 %v738
    %v771 = vunpack.c.l.b16 %v739
    %v772 = vunpack.c.l.b16 %v740
    %v773 = vunpack.c.l.b16 %v741
    %v774 = vunpack.c.l.b16 %v742
    %v775 = vunpack.c.l.b16 %v743
    %v776 = vunpack.c.l.b16 %v744
    %v777 = vunpack.c.l.b16 %v745
    %v778 = vunpack.c.l.b16 %v746
    %v779 = vunpack.c.l.b16 %v747
    %v780 = vunpack.c.l.b16 %v748
    %v781 = vunpack.c.l.b16 %v749
    %v782 = vpack.c.b16 %v767, %v766
    %v783 = vpack.c.b16 %v769, %v768
    %v784 = vpack.c.b16 %v771, %v770
    %v785 = vpack.c.b16 %v773, %v772
    %v786 = vpack.c.b16 %v775, %v774
    %v787 = vpack.c.b16 %v777, %v776
    %v788 = vpack.c.b16 %v779, %v778
    %v789 = vpack.c.b16 %v781, %v780
    %798 = vmatpush.bf16.msra.mxu0 %v789
    %799 = vmatpush.bf16.msra.mxu0 %v788
    %800 = vmatpush.bf16.msra.mxu0 %v787
    %801 = vmatpush.bf16.msra.mxu0 %v786
    %802 = vmatpush.bf16.msra.mxu0 %v785
    %803 = vmatpush.bf16.msra.mxu0 %v784
    %804 = vmatpush.bf16.msra.mxu0 %v783
    %805 = vmatpush.bf16.msra.mxu0 %v782
    %806 = vmatmul.bf16.gmra.mxu0 %v726
    %v807 = vpop.f32.mrf.mxu0
    %v808 = vadd.f32 0.0, %v807
    %v809 = vpop.f32.mrf.mxu0
    %v810 = vadd.f32 0.0, %v809
    %811 = vmatmul.bf16.gmra.mxu0 %v727
    %v812 = vpop.f32.mrf.mxu0
    %v813 = vadd.f32 0.0, %v812
    %v814 = vpop.f32.mrf.mxu0
    %v815 = vadd.f32 0.0, %v814
    %816 = vmatmul.bf16.gmra.mxu0 %v728
    %v817 = vpop.f32.mrf.mxu0
    %v818 = vadd.f32 0.0, %v817
    %v819 = vpop.f32.mrf.mxu0
    %v820 = vadd.f32 0.0, %v819
    %821 = vmatmul.bf16.gmra.mxu0 %v729
    %v822 = vpop.f32.mrf.mxu0
    %v823 = vadd.f32 0.0, %v822
    %v824 = vpop.f32.mrf.mxu0
    %v825 = vadd.f32 0.0, %v824
    %826 = vmatmul.bf16.gmra.mxu0 %v730
    %v827 = vpop.f32.mrf.mxu0
    %v828 = vadd.f32 0.0, %v827
    %v829 = vpop.f32.mrf.mxu0
    %v830 = vadd.f32 0.0, %v829
    %831 = vmatmul.bf16.gmra.mxu0 %v731
    %v832 = vpop.f32.mrf.mxu0
    %v833 = vadd.f32 0.0, %v832
    %v834 = vpop.f32.mrf.mxu0
    %v835 = vadd.f32 0.0, %v834
    %836 = vmatmul.bf16.gmra.mxu0 %v732
    %v837 = vpop.f32.mrf.mxu0
    %v838 = vadd.f32 0.0, %v837
    %v839 = vpop.f32.mrf.mxu0
    %v840 = vadd.f32 0.0, %v839
    %841 = vmatmul.bf16.gmra.mxu0 %v733
    %v842 = vpop.f32.mrf.mxu0
    %v843 = vadd.f32 0.0, %v842
    %v844 = vpop.f32.mrf.mxu0
    %v845 = vadd.f32 0.0, %v844
    %846 = vdwg.mxu0
    %v847 = vpack.c.bf16 %v810, %v808
    %v848 = vpack.c.bf16 %v815, %v813
    %v849 = vpack.c.bf16 %v820, %v818
    %v850 = vpack.c.bf16 %v825, %v823
    %v851 = vpack.c.bf16 %v830, %v828
    %v852 = vpack.c.bf16 %v835, %v833
    %v853 = vpack.c.bf16 %v840, %v838
    %v854 = vpack.c.bf16 %v845, %v843
    %v855 = vld [vmem:[%s7] sm:$0xf]
    %v856 = vld [vmem:[%s8] sm:$0xf]
    %857 = vmatpush.bf16.xpose.msra.mxu0 0
    %858 = vmatpush.bf16.xpose.msra.mxu0 0
    %859 = vmatpush.bf16.xpose.msra.mxu0 0
    %860 = vmatpush.bf16.xpose.msra.mxu0 0
    %861 = vmatpush.bf16.xpose.msra.mxu0 0
    %862 = vmatpush.bf16.xpose.msra.mxu0 0
    %863 = vmatpush.bf16.xpose.msra.mxu0 0
    %864 = vmatpush.bf16.xpose.msra.mxu0 %v855
    %865 = vmatmul.bf16.gmra.mxu0 %v847
    %v866 = vpop.f32.mrf.mxu0
    %v867 = vadd.f32 0.0, %v866
    %v868 = vpop.f32.mrf.mxu0
    %v869 = vadd.f32 0.0, %v868
    %870 = vmatmul.bf16.gmra.mxu0 %v848
    %v871 = vpop.f32.mrf.mxu0
    %v872 = vadd.f32 0.0, %v871
    %v873 = vpop.f32.mrf.mxu0
    %v874 = vadd.f32 0.0, %v873
    %875 = vmatmul.bf16.gmra.mxu0 %v849
    %v876 = vpop.f32.mrf.mxu0
    %v877 = vadd.f32 0.0, %v876
    %v878 = vpop.f32.mrf.mxu0
    %v879 = vadd.f32 0.0, %v878
    %880 = vmatmul.bf16.gmra.mxu0 %v850
    %v881 = vpop.f32.mrf.mxu0
    %v882 = vadd.f32 0.0, %v881
    %v883 = vpop.f32.mrf.mxu0
    %v884 = vadd.f32 0.0, %v883
    %885 = vmatmul.bf16.gmra.mxu0 %v851
    %v886 = vpop.f32.mrf.mxu0
    %v887 = vadd.f32 0.0, %v886
    %v888 = vpop.f32.mrf.mxu0
    %v889 = vadd.f32 0.0, %v888
    %890 = vmatmul.bf16.gmra.mxu0 %v852
    %v891 = vpop.f32.mrf.mxu0
    %v892 = vadd.f32 0.0, %v891
    %v893 = vpop.f32.mrf.mxu0
    %v894 = vadd.f32 0.0, %v893
    %895 = vmatmul.bf16.gmra.mxu0 %v853
    %v896 = vpop.f32.mrf.mxu0
    %v897 = vadd.f32 0.0, %v896
    %v898 = vpop.f32.mrf.mxu0
    %v899 = vadd.f32 0.0, %v898
    %900 = vmatmul.bf16.gmra.mxu0 %v854
    %v901 = vpop.f32.mrf.mxu0
    %v902 = vadd.f32 0.0, %v901
    %v903 = vpop.f32.mrf.mxu0
    %v904 = vadd.f32 0.0, %v903
    %905 = vdwg.mxu0
    %906 = vmatpush.bf16.xpose.msra.mxu0 %v854
    %907 = vmatpush.bf16.xpose.msra.mxu0 %v853
    %908 = vmatpush.bf16.xpose.msra.mxu0 %v852
    %909 = vmatpush.bf16.xpose.msra.mxu0 %v851
    %910 = vmatpush.bf16.xpose.msra.mxu0 %v850
    %911 = vmatpush.bf16.xpose.msra.mxu0 %v849
    %912 = vmatpush.bf16.xpose.msra.mxu0 %v848
    %913 = vmatpush.bf16.xpose.msra.mxu0 %v847
    %914 = vmatmul.bf16.gmra.mxu0 %v856
    %v915 = vpop.f32.mrf.mxu0
    %v916 = vadd.f32 0.0, %v915
    %v917 = vpop.f32.mrf.mxu0
    %918 = vdwg.mxu0
    %920 = vset.pattern.permute.xlu0 0
    %921 = vperm.xlu0 %920, %v867
    %v922 = vpop.permute.xlu0 %921
    %925 = vset.pattern.permute.xlu0 0
    %926 = vperm.xlu0 %925, %v869
    %v927 = vpop.permute.xlu0 %926
    %930 = vset.pattern.permute.xlu0 0
    %931 = vperm.xlu0 %930, %v872
    %v932 = vpop.permute.xlu0 %931
    %935 = vset.pattern.permute.xlu0 0
    %936 = vperm.xlu0 %935, %v874
    %v937 = vpop.permute.xlu0 %936
    %940 = vset.pattern.permute.xlu0 0
    %941 = vperm.xlu0 %940, %v877
    %v942 = vpop.permute.xlu0 %941
    %945 = vset.pattern.permute.xlu0 0
    %946 = vperm.xlu0 %945, %v879
    %v947 = vpop.permute.xlu0 %946
    %950 = vset.pattern.permute.xlu0 0
    %951 = vperm.xlu0 %950, %v882
    %v952 = vpop.permute.xlu0 %951
    %955 = vset.pattern.permute.xlu0 0
    %956 = vperm.xlu0 %955, %v884
    %v957 = vpop.permute.xlu0 %956
    %960 = vset.pattern.permute.xlu0 0
    %961 = vperm.xlu0 %960, %v887
    %v962 = vpop.permute.xlu0 %961
    %965 = vset.pattern.permute.xlu0 0
    %966 = vperm.xlu0 %965, %v889
    %v967 = vpop.permute.xlu0 %966
    %970 = vset.pattern.permute.xlu0 0
    %971 = vperm.xlu0 %970, %v892
    %v972 = vpop.permute.xlu0 %971
    %975 = vset.pattern.permute.xlu0 0
    %976 = vperm.xlu0 %975, %v894
    %v977 = vpop.permute.xlu0 %976
    %980 = vset.pattern.permute.xlu0 0
    %981 = vperm.xlu0 %980, %v897
    %v982 = vpop.permute.xlu0 %981
    %985 = vset.pattern.permute.xlu0 0
    %986 = vperm.xlu0 %985, %v899
    %v987 = vpop.permute.xlu0 %986
    %990 = vset.pattern.permute.xlu0 0
    %991 = vperm.xlu0 %990, %v902
    %v992 = vpop.permute.xlu0 %991
    %995 = vset.pattern.permute.xlu0 0
    %996 = vperm.xlu0 %995, %v904
    %v997 = vpop.permute.xlu0 %996
    %v999 = vperm.slane %v916, 0
    %v1000 = vadd.f32 %v922, %v999
    %v1001 = vadd.f32 %v927, %v999
    %v1002 = vadd.f32 %v932, %v999
    %v1003 = vadd.f32 %v937, %v999
    %v1004 = vadd.f32 %v942, %v999
    %v1005 = vadd.f32 %v947, %v999
    %v1006 = vadd.f32 %v952, %v999
    %v1007 = vadd.f32 %v957, %v999
    %v1008 = vadd.f32 %v962, %v999
    %v1009 = vadd.f32 %v967, %v999
    %v1010 = vadd.f32 %v972, %v999
    %v1011 = vadd.f32 %v977, %v999
    %v1012 = vadd.f32 %v982, %v999
    %v1013 = vadd.f32 %v987, %v999
    %v1014 = vadd.f32 %v992, %v999
    %v1015 = vadd.f32 %v997, %v999
    %v1016 = vmul.f32 %v1000, 0.2
    %v1017 = vmul.f32 %v1001, 0.2
    %v1018 = vmul.f32 %v1002, 0.2
    %v1019 = vmul.f32 %v1003, 0.2
    %v1020 = vmul.f32 %v1004, 0.2
    %v1021 = vmul.f32 %v1005, 0.2
    %v1022 = vmul.f32 %v1006, 0.2
    %v1023 = vmul.f32 %v1007, 0.2
    %v1024 = vmul.f32 %v1008, 0.2
    %v1025 = vmul.f32 %v1009, 0.2
    %v1026 = vmul.f32 %v1010, 0.2
    %v1027 = vmul.f32 %v1011, 0.2
    %v1028 = vmul.f32 %v1012, 0.2
    %v1029 = vmul.f32 %v1013, 0.2
    %v1030 = vmul.f32 %v1014, 0.2
    %v1031 = vmul.f32 %v1015, 0.2
    %v1032 = vmax.f32 %v1000, %v1016
    %v1033 = vmax.f32 %v1001, %v1017
    %v1034 = vmax.f32 %v1002, %v1018
    %v1035 = vmax.f32 %v1003, %v1019
    %v1036 = vmax.f32 %v1004, %v1020
    %v1037 = vmax.f32 %v1005, %v1021
    %v1038 = vmax.f32 %v1006, %v1022
    %v1039 = vmax.f32 %v1007, %v1023
    %v1040 = vmax.f32 %v1008, %v1024
    %v1041 = vmax.f32 %v1009, %v1025
    %v1042 = vmax.f32 %v1010, %v1026
    %v1043 = vmax.f32 %v1011, %v1027
    %v1044 = vmax.f32 %v1012, %v1028
    %v1045 = vmax.f32 %v1013, %v1029
    %v1046 = vmax.f32 %v1014, %v1030
    %v1047 = vmax.f32 %v1015, %v1031
    %v1048 = vadd.f32 %v1032, %v393
    %v1049 = vadd.f32 %v1033, %v394
    %v1050 = vadd.f32 %v1034, %v395
    %v1051 = vadd.f32 %v1035, %v396
    %v1052 = vadd.f32 %v1036, %v397
    %v1053 = vadd.f32 %v1037, %v398
    %v1054 = vadd.f32 %v1038, %v399
    %v1055 = vadd.f32 %v1039, %v400
    %v1056 = vadd.f32 %v1040, %v401
    %v1057 = vadd.f32 %v1041, %v402
    %v1058 = vadd.f32 %v1042, %v403
    %v1059 = vadd.f32 %v1043, %v404
    %v1060 = vadd.f32 %v1044, %v405
    %v1061 = vadd.f32 %v1045, %v406
    %v1062 = vadd.f32 %v1046, %v407
    %v1063 = vadd.f32 %v1047, %v408
    %1064 = vmax.xlane.f32.xlu0 %v1048
    %v1065 = vpop.xlane.xlu0 %1064
    %1066 = vmax.xlane.f32.xlu0 %v1049
    %v1067 = vpop.xlane.xlu0 %1066
    %1068 = vmax.xlane.f32.xlu0 %v1050
    %v1069 = vpop.xlane.xlu0 %1068
    %1070 = vmax.xlane.f32.xlu0 %v1051
    %v1071 = vpop.xlane.xlu0 %1070
    %1072 = vmax.xlane.f32.xlu0 %v1052
    %v1073 = vpop.xlane.xlu0 %1072
    %1074 = vmax.xlane.f32.xlu0 %v1053
    %v1075 = vpop.xlane.xlu0 %1074
    %1076 = vmax.xlane.f32.xlu0 %v1054
    %v1077 = vpop.xlane.xlu0 %1076
    %1078 = vmax.xlane.f32.xlu0 %v1055
    %v1079 = vpop.xlane.xlu0 %1078
    %1080 = vmax.xlane.f32.xlu0 %v1056
    %v1081 = vpop.xlane.xlu0 %1080
    %1082 = vmax.xlane.f32.xlu0 %v1057
    %v1083 = vpop.xlane.xlu0 %1082
    %1084 = vmax.xlane.f32.xlu0 %v1058
    %v1085 = vpop.xlane.xlu0 %1084
    %1086 = vmax.xlane.f32.xlu0 %v1059
    %v1087 = vpop.xlane.xlu0 %1086
    %1088 = vmax.xlane.f32.xlu0 %v1060
    %v1089 = vpop.xlane.xlu0 %1088
    %1090 = vmax.xlane.f32.xlu0 %v1061
    %v1091 = vpop.xlane.xlu0 %1090
    %1092 = vmax.xlane.f32.xlu0 %v1062
    %v1093 = vpop.xlane.xlu0 %1092
    %1094 = vmax.xlane.f32.xlu0 %v1063
    %v1095 = vpop.xlane.xlu0 %1094
    %v1096 = vsub.f32 %v1048, %v1065
    %v1097 = vsub.f32 %v1049, %v1067
    %v1098 = vsub.f32 %v1050, %v1069
    %v1099 = vsub.f32 %v1051, %v1071
    %v1100 = vsub.f32 %v1052, %v1073
    %v1101 = vsub.f32 %v1053, %v1075
    %v1102 = vsub.f32 %v1054, %v1077
    %v1103 = vsub.f32 %v1055, %v1079
    %v1104 = vsub.f32 %v1056, %v1081
    %v1105 = vsub.f32 %v1057, %v1083
    %v1106 = vsub.f32 %v1058, %v1085
    %v1107 = vsub.f32 %v1059, %v1087
    %v1108 = vsub.f32 %v1060, %v1089
    %v1109 = vsub.f32 %v1061, %v1091
    %v1110 = vsub.f32 %v1062, %v1093
    %v1111 = vsub.f32 %v1063, %v1095
    %v1112 = vmul.f32 %v1096, 1.442695
    %v1113 = vpow.pop %v1112
    %v1114 = vmul.f32 %v1097, 1.442695
    %v1115 = vpow.pop %v1114
    %v1116 = vmul.f32 %v1098, 1.442695
    %v1117 = vpow.pop %v1116
    %v1118 = vmul.f32 %v1099, 1.442695
    %v1119 = vpow.pop %v1118
    %v1120 = vmul.f32 %v1100, 1.442695
    %v1121 = vpow.pop %v1120
    %v1122 = vmul.f32 %v1101, 1.442695
    %v1123 = vpow.pop %v1122
    %v1124 = vmul.f32 %v1102, 1.442695
    %v1125 = vpow.pop %v1124
    %v1126 = vmul.f32 %v1103, 1.442695
    %v1127 = vpow.pop %v1126
    %v1128 = vmul.f32 %v1104, 1.442695
    %v1129 = vpow.pop %v1128
    %v1130 = vmul.f32 %v1105, 1.442695
    %v1131 = vpow.pop %v1130
    %v1132 = vmul.f32 %v1106, 1.442695
    %v1133 = vpow.pop %v1132
    %v1134 = vmul.f32 %v1107, 1.442695
    %v1135 = vpow.pop %v1134
    %v1136 = vmul.f32 %v1108, 1.442695
    %v1137 = vpow.pop %v1136
    %v1138 = vmul.f32 %v1109, 1.442695
    %v1139 = vpow.pop %v1138
    %v1140 = vmul.f32 %v1110, 1.442695
    %v1141 = vpow.pop %v1140
    %v1142 = vmul.f32 %v1111, 1.442695
    %v1143 = vpow.pop %v1142
    %1144 = vadd.xlane.f32.xlu0 %v1113
    %v1145 = vpop.xlane.xlu0 %1144
    %1146 = vadd.xlane.f32.xlu0 %v1115
    %v1147 = vpop.xlane.xlu0 %1146
    %1148 = vadd.xlane.f32.xlu0 %v1117
    %v1149 = vpop.xlane.xlu0 %1148
    %1150 = vadd.xlane.f32.xlu0 %v1119
    %v1151 = vpop.xlane.xlu0 %1150
    %1152 = vadd.xlane.f32.xlu0 %v1121
    %v1153 = vpop.xlane.xlu0 %1152
    %1154 = vadd.xlane.f32.xlu0 %v1123
    %v1155 = vpop.xlane.xlu0 %1154
    %1156 = vadd.xlane.f32.xlu0 %v1125
    %v1157 = vpop.xlane.xlu0 %1156
    %1158 = vadd.xlane.f32.xlu0 %v1127
    %v1159 = vpop.xlane.xlu0 %1158
    %1160 = vadd.xlane.f32.xlu0 %v1129
    %v1161 = vpop.xlane.xlu0 %1160
    %1162 = vadd.xlane.f32.xlu0 %v1131
    %v1163 = vpop.xlane.xlu0 %1162
    %1164 = vadd.xlane.f32.xlu0 %v1133
    %v1165 = vpop.xlane.xlu0 %1164
    %1166 = vadd.xlane.f32.xlu0 %v1135
    %v1167 = vpop.xlane.xlu0 %1166
    %1168 = vadd.xlane.f32.xlu0 %v1137
    %v1169 = vpop.xlane.xlu0 %1168
    %1170 = vadd.xlane.f32.xlu0 %v1139
    %v1171 = vpop.xlane.xlu0 %1170
    %1172 = vadd.xlane.f32.xlu0 %v1141
    %v1173 = vpop.xlane.xlu0 %1172
    %1174 = vadd.xlane.f32.xlu0 %v1143
    %v1175 = vpop.xlane.xlu0 %1174
    %v1176 = vpack.c.bf16 %v1115, %v1113
    %v1177 = vpack.c.bf16 %v1119, %v1117
    %v1178 = vpack.c.bf16 %v1123, %v1121
    %v1179 = vpack.c.bf16 %v1127, %v1125
    %v1180 = vpack.c.bf16 %v1131, %v1129
    %v1181 = vpack.c.bf16 %v1135, %v1133
    %v1182 = vpack.c.bf16 %v1139, %v1137
    %v1183 = vpack.c.bf16 %v1143, %v1141
    %1184 = vmatpush.bf16.msra.mxu0 %v854
    %1185 = vmatpush.bf16.msra.mxu0 %v853
    %1186 = vmatpush.bf16.msra.mxu0 %v852
    %1187 = vmatpush.bf16.msra.mxu0 %v851
    %1188 = vmatpush.bf16.msra.mxu0 %v850
    %1189 = vmatpush.bf16.msra.mxu0 %v849
    %1190 = vmatpush.bf16.msra.mxu0 %v848
    %1191 = vmatpush.bf16.msra.mxu0 %v847
    %1192 = vmatmul.bf16.gmra.mxu0 %v1176
    %v1193 = vpop.f32.mrf.mxu0
    %v1194 = vadd.f32 0.0, %v1193
    %v1195 = vpop.f32.mrf.mxu0
    %v1196 = vadd.f32 0.0, %v1195
    %1197 = vmatmul.bf16.gmra.mxu0 %v1177
    %v1198 = vpop.f32.mrf.mxu0
    %v1199 = vadd.f32 0.0, %v1198
    %v1200 = vpop.f32.mrf.mxu0
    %v1201 = vadd.f32 0.0, %v1200
    %1202 = vmatmul.bf16.gmra.mxu0 %v1178
    %v1203 = vpop.f32.mrf.mxu0
    %v1204 = vadd.f32 0.0, %v1203
    %v1205 = vpop.f32.mrf.mxu0
    %v1206 = vadd.f32 0.0, %v1205
    %1207 = vmatmul.bf16.gmra.mxu0 %v1179
    %v1208 = vpop.f32.mrf.mxu0
    %v1209 = vadd.f32 0.0, %v1208
    %v1210 = vpop.f32.mrf.mxu0
    %v1211 = vadd.f32 0.0, %v1210
    %1212 = vmatmul.bf16.gmra.mxu0 %v1180
    %v1213 = vpop.f32.mrf.mxu0
    %v1214 = vadd.f32 0.0, %v1213
    %v1215 = vpop.f32.mrf.mxu0
    %v1216 = vadd.f32 0.0, %v1215
    %1217 = vmatmul.bf16.gmra.mxu0 %v1181
    %v1218 = vpop.f32.mrf.mxu0
    %v1219 = vadd.f32 0.0, %v1218
    %v1220 = vpop.f32.mrf.mxu0
    %v1221 = vadd.f32 0.0, %v1220
    %1222 = vmatmul.bf16.gmra.mxu0 %v1182
    %v1223 = vpop.f32.mrf.mxu0
    %v1224 = vadd.f32 0.0, %v1223
    %v1225 = vpop.f32.mrf.mxu0
    %v1226 = vadd.f32 0.0, %v1225
    %1227 = vmatmul.bf16.gmra.mxu0 %v1183
    %v1228 = vpop.f32.mrf.mxu0
    %v1229 = vadd.f32 0.0, %v1228
    %v1230 = vpop.f32.mrf.mxu0
    %v1231 = vadd.f32 0.0, %v1230
    %1232 = vdwg.mxu0
    %v1233 = vrcp.pop %v1145
    %v1234 = vmul.f32 %v1145, %v1233
    %v1235 = vsub.f32 1.0, %v1234
    %v1236 = vmul.f32 %v1233, %v1235
    %v1237 = vadd.f32 %v1233, %v1236
    %vm1238 = vweird.f32 %v1145
    %vm1239 = vweird.f32 %v1233
    %vm1240 = vmor %vm1238, %vm1239
    %v1241 = vsel %vm1240, %v1233, %v1237
    %v1242 = vand.u32 2147483647, %v1145
    %vm1243 = vcmp.eq.f32.partialorder %v1242, 8.507059e+37
    %v1244 = vand.u32 %v1145, 2147483648
    %v1245 = vor.u32 1.1754944e-38, %v1244
    %v1246 = vsel %vm1243, %v1245, %v1241
    %v1247 = vmul.f32 %v1194, %v1246
    %v1248 = vrcp.pop %v1147
    %v1249 = vmul.f32 %v1147, %v1248
    %v1250 = vsub.f32 1.0, %v1249
    %v1251 = vmul.f32 %v1248, %v1250
    %v1252 = vadd.f32 %v1248, %v1251
    %vm1253 = vweird.f32 %v1147
    %vm1254 = vweird.f32 %v1248
    %vm1255 = vmor %vm1253, %vm1254
    %v1256 = vsel %vm1255, %v1248, %v1252
    %v1257 = vand.u32 2147483647, %v1147
    %vm1258 = vcmp.eq.f32.partialorder %v1257, 8.507059e+37
    %v1259 = vand.u32 %v1147, 2147483648
    %v1260 = vor.u32 1.1754944e-38, %v1259
    %v1261 = vsel %vm1258, %v1260, %v1256
    %v1262 = vmul.f32 %v1196, %v1261
    %v1263 = vrcp.pop %v1149
    %v1264 = vmul.f32 %v1149, %v1263
    %v1265 = vsub.f32 1.0, %v1264
    %v1266 = vmul.f32 %v1263, %v1265
    %v1267 = vadd.f32 %v1263, %v1266
    %vm1268 = vweird.f32 %v1149
    %vm1269 = vweird.f32 %v1263
    %vm1270 = vmor %vm1268, %vm1269
    %v1271 = vsel %vm1270, %v1263, %v1267
    %v1272 = vand.u32 2147483647, %v1149
    %vm1273 = vcmp.eq.f32.partialorder %v1272, 8.507059e+37
    %v1274 = vand.u32 %v1149, 2147483648
    %v1275 = vor.u32 1.1754944e-38, %v1274
    %v1276 = vsel %vm1273, %v1275, %v1271
    %v1277 = vmul.f32 %v1199, %v1276
    %v1278 = vrcp.pop %v1151
    %v1279 = vmul.f32 %v1151, %v1278
    %v1280 = vsub.f32 1.0, %v1279
    %v1281 = vmul.f32 %v1278, %v1280
    %v1282 = vadd.f32 %v1278, %v1281
    %vm1283 = vweird.f32 %v1151
    %vm1284 = vweird.f32 %v1278
    %vm1285 = vmor %vm1283, %vm1284
    %v1286 = vsel %vm1285, %v1278, %v1282
    %v1287 = vand.u32 2147483647, %v1151
    %vm1288 = vcmp.eq.f32.partialorder %v1287, 8.507059e+37
    %v1289 = vand.u32 %v1151, 2147483648
    %v1290 = vor.u32 1.1754944e-38, %v1289
    %v1291 = vsel %vm1288, %v1290, %v1286
    %v1292 = vmul.f32 %v1201, %v1291
    %v1293 = vrcp.pop %v1153
    %v1294 = vmul.f32 %v1153, %v1293
    %v1295 = vsub.f32 1.0, %v1294
    %v1296 = vmul.f32 %v1293, %v1295
    %v1297 = vadd.f32 %v1293, %v1296
    %vm1298 = vweird.f32 %v1153
    %vm1299 = vweird.f32 %v1293
    %vm1300 = vmor %vm1298, %vm1299
    %v1301 = vsel %vm1300, %v1293, %v1297
    %v1302 = vand.u32 2147483647, %v1153
    %vm1303 = vcmp.eq.f32.partialorder %v1302, 8.507059e+37
    %v1304 = vand.u32 %v1153, 2147483648
    %v1305 = vor.u32 1.1754944e-38, %v1304
    %v1306 = vsel %vm1303, %v1305, %v1301
    %v1307 = vmul.f32 %v1204, %v1306
    %v1308 = vrcp.pop %v1155
    %v1309 = vmul.f32 %v1155, %v1308
    %v1310 = vsub.f32 1.0, %v1309
    %v1311 = vmul.f32 %v1308, %v1310
    %v1312 = vadd.f32 %v1308, %v1311
    %vm1313 = vweird.f32 %v1155
    %vm1314 = vweird.f32 %v1308
    %vm1315 = vmor %vm1313, %vm1314
    %v1316 = vsel %vm1315, %v1308, %v1312
    %v1317 = vand.u32 2147483647, %v1155
    %vm1318 = vcmp.eq.f32.partialorder %v1317, 8.507059e+37
    %v1319 = vand.u32 %v1155, 2147483648
    %v1320 = vor.u32 1.1754944e-38, %v1319
    %v1321 = vsel %vm1318, %v1320, %v1316
    %v1322 = vmul.f32 %v1206, %v1321
    %v1323 = vrcp.pop %v1157
    %v1324 = vmul.f32 %v1157, %v1323
    %v1325 = vsub.f32 1.0, %v1324
    %v1326 = vmul.f32 %v1323, %v1325
    %v1327 = vadd.f32 %v1323, %v1326
    %vm1328 = vweird.f32 %v1157
    %vm1329 = vweird.f32 %v1323
    %vm1330 = vmor %vm1328, %vm1329
    %v1331 = vsel %vm1330, %v1323, %v1327
    %v1332 = vand.u32 2147483647, %v1157
    %vm1333 = vcmp.eq.f32.partialorder %v1332, 8.507059e+37
    %v1334 = vand.u32 %v1157, 2147483648
    %v1335 = vor.u32 1.1754944e-38, %v1334
    %v1336 = vsel %vm1333, %v1335, %v1331
    %v1337 = vmul.f32 %v1209, %v1336
    %v1338 = vrcp.pop %v1159
    %v1339 = vmul.f32 %v1159, %v1338
    %v1340 = vsub.f32 1.0, %v1339
    %v1341 = vmul.f32 %v1338, %v1340
    %v1342 = vadd.f32 %v1338, %v1341
    %vm1343 = vweird.f32 %v1159
    %vm1344 = vweird.f32 %v1338
    %vm1345 = vmor %vm1343, %vm1344
    %v1346 = vsel %vm1345, %v1338, %v1342
    %v1347 = vand.u32 2147483647, %v1159
    %vm1348 = vcmp.eq.f32.partialorder %v1347, 8.507059e+37
    %v1349 = vand.u32 %v1159, 2147483648
    %v1350 = vor.u32 1.1754944e-38, %v1349
    %v1351 = vsel %vm1348, %v1350, %v1346
    %v1352 = vmul.f32 %v1211, %v1351
    %v1353 = vrcp.pop %v1161
    %v1354 = vmul.f32 %v1161, %v1353
    %v1355 = vsub.f32 1.0, %v1354
    %v1356 = vmul.f32 %v1353, %v1355
    %v1357 = vadd.f32 %v1353, %v1356
    %vm1358 = vweird.f32 %v1161
    %vm1359 = vweird.f32 %v1353
    %vm1360 = vmor %vm1358, %vm1359
    %v1361 = vsel %vm1360, %v1353, %v1357
    %v1362 = vand.u32 2147483647, %v1161
    %vm1363 = vcmp.eq.f32.partialorder %v1362, 8.507059e+37
    %v1364 = vand.u32 %v1161, 2147483648
    %v1365 = vor.u32 1.1754944e-38, %v1364
    %v1366 = vsel %vm1363, %v1365, %v1361
    %v1367 = vmul.f32 %v1214, %v1366
    %v1368 = vrcp.pop %v1163
    %v1369 = vmul.f32 %v1163, %v1368
    %v1370 = vsub.f32 1.0, %v1369
    %v1371 = vmul.f32 %v1368, %v1370
    %v1372 = vadd.f32 %v1368, %v1371
    %vm1373 = vweird.f32 %v1163
    %vm1374 = vweird.f32 %v1368
    %vm1375 = vmor %vm1373, %vm1374
    %v1376 = vsel %vm1375, %v1368, %v1372
    %v1377 = vand.u32 2147483647, %v1163
    %vm1378 = vcmp.eq.f32.partialorder %v1377, 8.507059e+37
    %v1379 = vand.u32 %v1163, 2147483648
    %v1380 = vor.u32 1.1754944e-38, %v1379
    %v1381 = vsel %vm1378, %v1380, %v1376
    %v1382 = vmul.f32 %v1216, %v1381
    %v1383 = vrcp.pop %v1165
    %v1384 = vmul.f32 %v1165, %v1383
    %v1385 = vsub.f32 1.0, %v1384
    %v1386 = vmul.f32 %v1383, %v1385
    %v1387 = vadd.f32 %v1383, %v1386
    %vm1388 = vweird.f32 %v1165
    %vm1389 = vweird.f32 %v1383
    %vm1390 = vmor %vm1388, %vm1389
    %v1391 = vsel %vm1390, %v1383, %v1387
    %v1392 = vand.u32 2147483647, %v1165
    %vm1393 = vcmp.eq.f32.partialorder %v1392, 8.507059e+37
    %v1394 = vand.u32 %v1165, 2147483648
    %v1395 = vor.u32 1.1754944e-38, %v1394
    %v1396 = vsel %vm1393, %v1395, %v1391
    %v1397 = vmul.f32 %v1219, %v1396
    %v1398 = vrcp.pop %v1167
    %v1399 = vmul.f32 %v1167, %v1398
    %v1400 = vsub.f32 1.0, %v1399
    %v1401 = vmul.f32 %v1398, %v1400
    %v1402 = vadd.f32 %v1398, %v1401
    %vm1403 = vweird.f32 %v1167
    %vm1404 = vweird.f32 %v1398
    %vm1405 = vmor %vm1403, %vm1404
    %v1406 = vsel %vm1405, %v1398, %v1402
    %v1407 = vand.u32 2147483647, %v1167
    %vm1408 = vcmp.eq.f32.partialorder %v1407, 8.507059e+37
    %v1409 = vand.u32 %v1167, 2147483648
    %v1410 = vor.u32 1.1754944e-38, %v1409
    %v1411 = vsel %vm1408, %v1410, %v1406
    %v1412 = vmul.f32 %v1221, %v1411
    %v1413 = vrcp.pop %v1169
    %v1414 = vmul.f32 %v1169, %v1413
    %v1415 = vsub.f32 1.0, %v1414
    %v1416 = vmul.f32 %v1413, %v1415
    %v1417 = vadd.f32 %v1413, %v1416
    %vm1418 = vweird.f32 %v1169
    %vm1419 = vweird.f32 %v1413
    %vm1420 = vmor %vm1418, %vm1419
    %v1421 = vsel %vm1420, %v1413, %v1417
    %v1422 = vand.u32 2147483647, %v1169
    %vm1423 = vcmp.eq.f32.partialorder %v1422, 8.507059e+37
    %v1424 = vand.u32 %v1169, 2147483648
    %v1425 = vor.u32 1.1754944e-38, %v1424
    %v1426 = vsel %vm1423, %v1425, %v1421
    %v1427 = vmul.f32 %v1224, %v1426
    %v1428 = vrcp.pop %v1171
    %v1429 = vmul.f32 %v1171, %v1428
    %v1430 = vsub.f32 1.0, %v1429
    %v1431 = vmul.f32 %v1428, %v1430
    %v1432 = vadd.f32 %v1428, %v1431
    %vm1433 = vweird.f32 %v1171
    %vm1434 = vweird.f32 %v1428
    %vm1435 = vmor %vm1433, %vm1434
    %v1436 = vsel %vm1435, %v1428, %v1432
    %v1437 = vand.u32 2147483647, %v1171
    %vm1438 = vcmp.eq.f32.partialorder %v1437, 8.507059e+37
    %v1439 = vand.u32 %v1171, 2147483648
    %v1440 = vor.u32 1.1754944e-38, %v1439
    %v1441 = vsel %vm1438, %v1440, %v1436
    %v1442 = vmul.f32 %v1226, %v1441
    %v1443 = vrcp.pop %v1173
    %v1444 = vmul.f32 %v1173, %v1443
    %v1445 = vsub.f32 1.0, %v1444
    %v1446 = vmul.f32 %v1443, %v1445
    %v1447 = vadd.f32 %v1443, %v1446
    %vm1448 = vweird.f32 %v1173
    %vm1449 = vweird.f32 %v1443
    %vm1450 = vmor %vm1448, %vm1449
    %v1451 = vsel %vm1450, %v1443, %v1447
    %v1452 = vand.u32 2147483647, %v1173
    %vm1453 = vcmp.eq.f32.partialorder %v1452, 8.507059e+37
    %v1454 = vand.u32 %v1173, 2147483648
    %v1455 = vor.u32 1.1754944e-38, %v1454
    %v1456 = vsel %vm1453, %v1455, %v1451
    %v1457 = vmul.f32 %v1229, %v1456
    %v1458 = vrcp.pop %v1175
    %v1459 = vmul.f32 %v1175, %v1458
    %v1460 = vsub.f32 1.0, %v1459
    %v1461 = vmul.f32 %v1458, %v1460
    %v1462 = vadd.f32 %v1458, %v1461
    %vm1463 = vweird.f32 %v1175
    %vm1464 = vweird.f32 %v1458
    %vm1465 = vmor %vm1463, %vm1464
    %v1466 = vsel %vm1465, %v1458, %v1462
    %v1467 = vand.u32 2147483647, %v1175
    %vm1468 = vcmp.eq.f32.partialorder %v1467, 8.507059e+37
    %v1469 = vand.u32 %v1175, 2147483648
    %v1470 = vor.u32 1.1754944e-38, %v1469
    %v1471 = vsel %vm1468, %v1470, %v1466
    %v1472 = vmul.f32 %v1231, %v1471
    %v1473 = vld [vmem:[%s9] sm:$0x1]
    %v1475 = vperm.slane %v1473, 0
    %v1477 = vadd.f32 %v1247, %v1475
    %v1478 = vadd.f32 %v1262, %v1475
    %v1479 = vadd.f32 %v1277, %v1475
    %v1480 = vadd.f32 %v1292, %v1475
    %v1481 = vadd.f32 %v1307, %v1475
    %v1482 = vadd.f32 %v1322, %v1475
    %v1483 = vadd.f32 %v1337, %v1475
    %v1484 = vadd.f32 %v1352, %v1475
    %v1485 = vadd.f32 %v1367, %v1475
    %v1486 = vadd.f32 %v1382, %v1475
    %v1487 = vadd.f32 %v1397, %v1475
    %v1488 = vadd.f32 %v1412, %v1475
    %v1489 = vadd.f32 %v1427, %v1475
    %v1490 = vadd.f32 %v1442, %v1475
    %v1491 = vadd.f32 %v1457, %v1475
    %v1492 = vadd.f32 %v1472, %v1475
    %1493 = vst [vmem:[%s10] sm:$0xff] %v1477
    %1494 = vst [vmem:[%s10 + $0x8] sm:$0xff] %v1478
    %1495 = vst [vmem:[%s10 + $0x10] sm:$0xff] %v1479
    %1496 = vst [vmem:[%s10 + $0x18] sm:$0xff] %v1480
    %1497 = vst [vmem:[%s10 + $0x20] sm:$0xff] %v1481
    %1498 = vst [vmem:[%s10 + $0x28] sm:$0xff] %v1482
    %1499 = vst [vmem:[%s10 + $0x30] sm:$0xff] %v1483
    %1500 = vst [vmem:[%s10 + $0x38] sm:$0xff] %v1484
    %1501 = vst [vmem:[%s10 + $0x40] sm:$0xff] %v1485
    %1502 = vst [vmem:[%s10 + $0x48] sm:$0xff] %v1486
    %1503 = vst [vmem:[%s10 + $0x50] sm:$0xff] %v1487
    %1504 = vst [vmem:[%s10 + $0x58] sm:$0xff] %v1488
    %1505 = vst [vmem:[%s10 + $0x60] sm:$0xff] %v1489
    %1506 = vst [vmem:[%s10 + $0x68] sm:$0xff] %v1490
    %1507 = vst [vmem:[%s10 + $0x70] sm:$0xff] %v1491
    %1508 = vst [vmem:[%s10 + $0x78] sm:$0xff] %v1492
    %v1509 = vsub.f32 %v1477, %v39
    %v1510 = vsub.f32 %v1478, %v40
    %v1511 = vsub.f32 %v1479, %v41
    %v1512 = vsub.f32 %v1480, %v42
    %v1513 = vsub.f32 %v1481, %v43
    %v1514 = vsub.f32 %v1482, %v44
    %v1515 = vsub.f32 %v1483, %v45
    %v1516 = vsub.f32 %v1484, %v46
    %v1517 = vsub.f32 %v1485, %v47
    %v1518 = vsub.f32 %v1486, %v48
    %v1519 = vsub.f32 %v1487, %v49
    %v1520 = vsub.f32 %v1488, %v50
    %v1521 = vsub.f32 %v1489, %v51
    %v1522 = vsub.f32 %v1490, %v52
    %v1523 = vsub.f32 %v1491, %v53
    %v1524 = vsub.f32 %v1492, %v54
    %v1525 = vlaneseq
    %v1526 = vshrl.u32 %v1525, 7
    %v1527 = vadd.s32 %v1526, 8
    %v1528 = vadd.s32 %v1526, 16
    %v1529 = vadd.s32 %v1526, 24
    %v1530 = vadd.s32 %v1526, 32
    %v1531 = vadd.s32 %v1526, 40
    %v1532 = vadd.s32 %v1526, 48
    %v1533 = vadd.s32 %v1526, 56
    %v1534 = vadd.s32 %v1526, 64
    %v1535 = vadd.s32 %v1526, 72
    %v1536 = vadd.s32 %v1526, 80
    %v1537 = vadd.s32 %v1526, 88
    %v1538 = vadd.s32 %v1526, 96
    %v1539 = vadd.s32 %v1526, 104
    %v1540 = vadd.s32 %v1526, 112
    %v1541 = vadd.s32 %v1526, 120
    %vm1542 = vcmp.lt.s32.totalorder %v1526, 112
    %vm1543 = vcmp.lt.s32.totalorder %v1527, 112
    %vm1544 = vcmp.lt.s32.totalorder %v1528, 112
    %vm1545 = vcmp.lt.s32.totalorder %v1529, 112
    %vm1546 = vcmp.lt.s32.totalorder %v1530, 112
    %vm1547 = vcmp.lt.s32.totalorder %v1531, 112
    %vm1548 = vcmp.lt.s32.totalorder %v1532, 112
    %vm1549 = vcmp.lt.s32.totalorder %v1533, 112
    %vm1550 = vcmp.lt.s32.totalorder %v1534, 112
    %vm1551 = vcmp.lt.s32.totalorder %v1535, 112
    %vm1552 = vcmp.lt.s32.totalorder %v1536, 112
    %vm1553 = vcmp.lt.s32.totalorder %v1537, 112
    %vm1554 = vcmp.lt.s32.totalorder %v1538, 112
    %vm1555 = vcmp.lt.s32.totalorder %v1539, 112
    %vm1556 = vcmp.lt.s32.totalorder %v1540, 112
    %vm1557 = vcmp.lt.s32.totalorder %v1541, 112
    %v1558 = vsel %vm1542, %v1509, 0.0
    %v1559 = vsel %vm1543, %v1510, 0.0
    %v1560 = vsel %vm1544, %v1511, 0.0
    %v1561 = vsel %vm1545, %v1512, 0.0
    %v1562 = vsel %vm1546, %v1513, 0.0
    %v1563 = vsel %vm1547, %v1514, 0.0
    %v1564 = vsel %vm1548, %v1515, 0.0
    %v1565 = vsel %vm1549, %v1516, 0.0
    %v1566 = vsel %vm1550, %v1517, 0.0
    %v1567 = vsel %vm1551, %v1518, 0.0
    %v1568 = vsel %vm1552, %v1519, 0.0
    %v1569 = vsel %vm1553, %v1520, 0.0
    %v1570 = vsel %vm1554, %v1521, 0.0
    %v1571 = vsel %vm1555, %v1522, 0.0
    %v1572 = vsel %vm1556, %v1523, 0.0
    %v1573 = vsel %vm1557, %v1524, 0.0
    %v1574 = vmul.f32 %v1558, %v1558
    %v1575 = vmul.f32 %v1559, %v1559
    %v1576 = vmul.f32 %v1560, %v1560
    %v1577 = vmul.f32 %v1561, %v1561
    %v1578 = vmul.f32 %v1562, %v1562
    %v1579 = vmul.f32 %v1563, %v1563
    %v1580 = vmul.f32 %v1564, %v1564
    %v1581 = vmul.f32 %v1565, %v1565
    %v1582 = vmul.f32 %v1566, %v1566
    %v1583 = vmul.f32 %v1567, %v1567
    %v1584 = vmul.f32 %v1568, %v1568
    %v1585 = vmul.f32 %v1569, %v1569
    %v1586 = vmul.f32 %v1570, %v1570
    %v1587 = vmul.f32 %v1571, %v1571
    %v1588 = vmul.f32 %v1572, %v1572
    %v1589 = vmul.f32 %v1573, %v1573
    %v1590 = vadd.f32 %v1574, %v1575
    %v1591 = vadd.f32 %v1590, %v1576
    %v1592 = vadd.f32 %v1591, %v1577
    %v1593 = vadd.f32 %v1592, %v1578
    %v1594 = vadd.f32 %v1593, %v1579
    %v1595 = vadd.f32 %v1594, %v1580
    %v1596 = vadd.f32 %v1595, %v1581
    %v1597 = vadd.f32 %v1596, %v1582
    %v1598 = vadd.f32 %v1597, %v1583
    %v1599 = vadd.f32 %v1598, %v1584
    %v1600 = vadd.f32 %v1599, %v1585
    %v1601 = vadd.f32 %v1600, %v1586
    %v1602 = vadd.f32 %v1601, %v1587
    %v1603 = vadd.f32 %v1602, %v1588
    %v1604 = vadd.f32 %v1603, %v1589
    %1605 = vadd.xlane.f32.xlu0 %v1604
    %v1606 = vpop.xlane.xlu0 %1605
    %v1607 = vrot.slane %v1606, 4
    %v1608 = vadd.f32 %v1606, %v1607
    %v1609 = vrot.slane %v1608, 2
    %v1610 = vadd.f32 %v1608, %v1609
    %v1611 = vrot.slane %v1610, 1
    %v1612 = vadd.f32 %v1610, %v1611
    %s1613 = vtos %v1612
    %v1614 = vrcp.pop 1792.0
    %v1615 = vmul.f32 1792.0, %v1614
    %v1616 = vsub.f32 1.0, %v1615
    %v1617 = vmul.f32 %v1614, %v1616
    %v1618 = vadd.f32 %v1614, %v1617
    %vm1619 = vweird.f32 %v1614
    %v1620 = vsel %vm1619, %v1614, %v1618
    %s1621 = vtos %v1620
    %s1622 = smul.f32 %s1613, %s1621
    %s1623 = scalar_lea.smem [#allocation2], 0
    %1624 = sst [smem:[%s1623]] %s1622
    // Predicated region
    $region42: #{gat_anomaly_detector.1} parent=1 // pred_check
      _
    $region43: #{gat_anomaly_detector.1} parent=1 // pred_check_branch
      %1626 = sbr.rel (0) target = $region45
    $region44: #{gat_anomaly_detector.1} parent=1 // pred_region
      _
    $region45: #{gat_anomaly_detector.1} parent=1 // pred_fallthru
      _
    // Predicated region
    $region46: #{gat_anomaly_detector.1} parent=1 // pred_check
      _
    $region47: #{gat_anomaly_detector.1} parent=1 // pred_check_branch
      %1628 = sbr.rel (0) target = $region49
    $region48: #{gat_anomaly_detector.1} parent=1 // pred_region
      %1630 = vsyncadd [#allocation3], 0
      %s1632 = sshll.u32 %s11, 4
      %s1633 = int_to_ptr.hbm [resolvable:$true] %s1632
      %1635 = dma.smem_to_hbm [#allocation2], 16, %s1633, [#allocation3]
    $region49: #{gat_anomaly_detector.1} parent=1 // pred_fallthru
      _
    // Predicated region
    $region50: #{gat_anomaly_detector.1} parent=1 // pred_check
      _
    $region51: #{gat_anomaly_detector.1} parent=1 // pred_check_branch
      %1637 = sbr.rel (0) target = $region53
    $region52: #{gat_anomaly_detector.1} parent=1 // pred_region
      _
    $region53: #{gat_anomaly_detector.1} parent=1 // pred_fallthru
      _
    // Predicated region
    $region54: #{gat_anomaly_detector.1} parent=1 // pred_check
      _
    $region55: #{gat_anomaly_detector.1} parent=1 // pred_check_branch
      %1639 = sbr.rel (0) target = $region57
    $region56: #{gat_anomaly_detector.1} parent=1 // pred_region
      %1641 = dma.done [#allocation3], 16
    $region57: #{gat_anomaly_detector.1} parent=1 // pred_fallthru
      _
    %1642 = sfence
    %1643 = vsyncpa [#allocation3], 1

</llo_original>
